<compile_context>
chip_gen: v6e
topology: v6e:2x2x1
jax: 0.10.0
libtpu: 0.0.40
codegen_flags: <defaults>
</compile_context>

<pallas_src>
import math

import numpy as np
import jax
import jax.numpy as jnp
from jax import lax
from jax.experimental import pallas as pl
from jax.experimental.pallas import tpu as pltpu


def _make_kernel(TQ, N, C, H, L, K, spatial_shapes, level_start, scale):
    D = C // H
    LK = L * K

    def kernel(q_ref, ref_ref, x_ref, wv_ref, bv_ref, ws_ref, bs_ref,
               wa_ref, ba_ref, wo_ref, bo_ref, out_ref, value_ref):
        qt = pl.program_id(1)

        # ---- value projection: once per batch element (first Q tile only) ---
        @pl.when(qt == 0)
        def _():
            x = x_ref[0]                                          # (N, C) f32
            v = jnp.dot(x.astype(jnp.bfloat16), wv_ref[...],
                        preferred_element_type=jnp.float32) + bv_ref[...]
            value_ref[...] = v.astype(jnp.bfloat16)               # persistent

        q = q_ref[0]                                              # (TQ, C)
        refp = ref_ref[0]                                         # (TQ, 4)

        # sampling-offset / attention-logit projections (small, keep f32 so
        # sampling locations and the softmax are exact)
        samp = jnp.dot(q, ws_ref[...],
                       preferred_element_type=jnp.float32) + bs_ref[...]
        attn = jnp.dot(q, wa_ref[...],
                       preferred_element_type=jnp.float32) + ba_ref[...]

        cx = refp[:, 0:1]
        cy = refp[:, 1:2]
        inv_scale = 1.0 / scale

        # hoisted per-level terms: pixel-coordinate bases (TQ, 1) and static
        # row/column maps (1, N_l) of each level's flattened grid.
        px_base, py_base, col_map, row_map = [], [], [], []
        for (Hl, Wl) in spatial_shapes:
            Nl = Hl * Wl
            px_base.append(cx * float(Wl) - 0.5)
            py_base.append(cy * float(Hl) - 0.5)
            nf = lax.broadcasted_iota(jnp.int32, (1, Nl), 1).astype(jnp.float32)
            r = jnp.floor((nf + 0.5) * (1.0 / Wl))                # row index
            col_map.append(nf - r * float(Wl))                    # col index
            row_map.append(r)

        head_outs = []
        for h in range(H):
            # softmax over the L*K slots of this head (f32)
            sl = attn[:, h * LK:(h + 1) * LK]
            m = jnp.max(sl, axis=-1, keepdims=True)
            e = jnp.exp(sl - m)
            # reciprocal-then-multiply so the divide happens once per query
            # (lowered to the EUP reciprocal path when compiled).
            aw = e * (1.0 / jnp.sum(e, axis=-1, keepdims=True))   # (TQ, LK)

            acc = jnp.zeros((TQ, D), jnp.float32)
            for l, (Hl, Wl) in enumerate(spatial_shapes):
                start = level_start[l]
                Nl = Hl * Wl
                wl_s = float(Wl) * inv_scale
                hl_s = float(Hl) * inv_scale
                agg = jnp.zeros((TQ, Nl), jnp.float32)
                for k in range(K):
                    base = ((h * L + l) * K + k) * 2
                    px = px_base[l] + samp[:, base:base + 1] * wl_s   # (TQ,1)
                    py = py_base[l] + samp[:, base + 1:base + 2] * hl_s
                    a = aw[:, l * K + k:l * K + k + 1]                # (TQ,1)
                    # bilinear "tent" weights over this level's grid; samples
                    # outside the level get zero weight automatically (exact
                    # grid_sample zeros-padding / align_corners=False).
                    wx = jnp.maximum(1.0 - jnp.abs(px - col_map[l]), 0.0)
                    wy = jnp.maximum(1.0 - jnp.abs(py - row_map[l]), 0.0)
                    agg = agg + (a * wy) * wx                         # (TQ,Nl)
                v_l = value_ref[start:start + Nl, :]                  # bf16
                vh = v_l[:, h * D:(h + 1) * D]                        # (Nl, D)
                acc = acc + jnp.dot(agg.astype(jnp.bfloat16), vh,
                                    preferred_element_type=jnp.float32)
            head_outs.append(acc)

        # lane-dense (TQ, C) result, single output projection + full-width store
        res = jnp.concatenate(head_outs, axis=-1)
        out = jnp.dot(res.astype(jnp.bfloat16), wo_ref[...],
                      preferred_element_type=jnp.float32) + bo_ref[...]
        out_ref[0] = out

    return kernel


def ms_deform_attn_forward(query, ref_points, input_flatten, spatial_shapes,
                           params, n_heads, n_points, scale=8.0, q_tile=None):
    B, Q, C = query.shape
    _, N, _ = input_flatten.shape
    L = len(spatial_shapes)
    level_start, s = [], 0
    for (Hl, Wl) in spatial_shapes:
        level_start.append(s)
        s += Hl * Wl
    assert s == N

    Wv, bv, Ws, bs, Wa, ba, Wo, bo = params
    # big projection weights in bf16 (f32 accumulation on the MXU)
    Wv = Wv.astype(jnp.bfloat16)
    Wo = Wo.astype(jnp.bfloat16)

    if q_tile is None:
        q_tile = Q if Q <= 128 else 128
    assert Q % q_tile == 0 and (q_tile == Q or q_tile % 8 == 0), (Q, q_tile)
    n_q_tiles = Q // q_tile

    kernel = _make_kernel(q_tile, N, C, n_heads, L, n_points,
                          spatial_shapes, level_start, scale)

    def full(arr):
        shp = arr.shape
        return pl.BlockSpec(shp, lambda b, qt: (0,) * len(shp))

    grid_spec = pltpu.PrefetchScalarGridSpec(
        num_scalar_prefetch=0,
        grid=(B, n_q_tiles),
        in_specs=[
            pl.BlockSpec((1, q_tile, C), lambda b, qt: (b, qt, 0)),
            pl.BlockSpec((1, q_tile, 4), lambda b, qt: (b, qt, 0)),
            pl.BlockSpec((1, N, C), lambda b, qt: (b, 0, 0)),
            full(Wv), full(bv), full(Ws), full(bs),
            full(Wa), full(ba), full(Wo), full(bo),
        ],
        out_specs=pl.BlockSpec((1, q_tile, C), lambda b, qt: (b, qt, 0)),
        scratch_shapes=[pltpu.VMEM((N, C), jnp.bfloat16)],   # projected value
    )

    # explicit VMEM budget: double-buffered in/out blocks + weights + scratch
    blk_bytes = 4 * (2 * q_tile * C + q_tile * 4 + N * C)     # f32 blocks
    wt_bytes = sum(int(np.prod(w.shape)) * w.dtype.itemsize
                   for w in (Wv, bv, Ws, bs, Wa, ba, Wo, bo))
    est = 2 * (blk_bytes + wt_bytes) + N * C * 2
    vmem_limit = int(min(max(2 * est, 16 * 1024 * 1024), 64 * 1024 * 1024))

    return pl.pallas_call(
        kernel,
        out_shape=jax.ShapeDtypeStruct((B, Q, C), jnp.float32),
        grid_spec=grid_spec,
        compiler_params=pltpu.CompilerParams(
            dimension_semantics=("parallel", "arbitrary"),
            vmem_limit_bytes=vmem_limit),
    )(query, ref_points, input_flatten, Wv, bv, Ws, bs, Wa, ba, Wo, bo)


def init_params(key, C, H, L, K, scale=8.0):
    """Deterministic init following MSDeformAttn._reset_parameters."""
    kv, ko = jax.random.split(key)
    bound = math.sqrt(6.0 / (C + C))                      # xavier_uniform
    Wv = jax.random.uniform(kv, (C, C), jnp.float32, -bound, bound)
    bv = jnp.zeros((1, C), jnp.float32)
    Wo = jax.random.uniform(ko, (C, C), jnp.float32, -bound, bound)
    bo = jnp.zeros((1, C), jnp.float32)

    # sampling_offsets: weight = 0, bias = grid_init (spatial mode)
    thetas = jnp.arange(H, dtype=jnp.float32) * (2.0 * math.pi / H)
    g = jnp.stack([jnp.cos(thetas), jnp.sin(thetas)], -1)          # (H, 2)
    g = g / jnp.max(jnp.abs(g), axis=-1, keepdims=True)
    g = jnp.broadcast_to(g[:, None, None, :], (H, L, K, 2))
    g = g * jnp.arange(1, K + 1, dtype=jnp.float32)[None, None, :, None]
    g = g / K * scale
    lvl_scales = jnp.arange(1, L + 1, dtype=jnp.float32)           # spatial
    g = g * 0.05 * lvl_scales[None, :, None, None]
    Ws = jnp.zeros((C, H * L * K * 2), jnp.float32)
    bs = g.reshape(1, -1)

    # attention_weights: weight = 0, bias = 0
    Wa = jnp.zeros((C, H * L * K), jnp.float32)
    ba = jnp.zeros((1, H * L * K), jnp.float32)
    return Wv, bv, Ws, bs, Wa, ba, Wo, bo


def ref_forward(query, refp, x, spatial_shapes, params, H, K, scale=8.0):
    """Pure-JAX f32 reference (same semantics as PyTorch ms_deform_attn core)."""
    Wv, bv, Ws, bs, Wa, ba, Wo, bo = params
    B, Q, C = query.shape
    L = len(spatial_shapes)
    N = x.shape[1]
    D = C // H
    value = (x @ Wv + bv).reshape(B, N, H, D)
    samp = (query @ Ws + bs).reshape(B, Q, H, L, K, 2)
    attn = (query @ Wa + ba).reshape(B, Q, H, L * K)
    attn = jax.nn.softmax(attn, axis=-1).reshape(B, Q, H, L, K)
    loc = refp[:, :, None, None, None, :2] + samp / scale
    out = jnp.zeros((B, Q, H, D), jnp.float32)
    b_idx = jnp.arange(B)[:, None, None, None]
    h_idx = jnp.arange(H)[None, None, :, None]
    start = 0
    for l, (Hl, Wl) in enumerate(spatial_shapes):
        v_l = value[:, start:start + Hl * Wl].reshape(B, Hl, Wl, H, D)
        start += Hl * Wl
        px = loc[:, :, :, l, :, 0] * Wl - 0.5
        py = loc[:, :, :, l, :, 1] * Hl - 0.5
        x0f = jnp.floor(px)
        y0f = jnp.floor(py)
        lx = px - x0f
        ly = py - y0f
        x0 = x0f.astype(jnp.int32)
        y0 = y0f.astype(jnp.int32)
        a = attn[:, :, :, l, :]
        for dx, dy in ((0, 0), (1, 0), (0, 1), (1, 1)):
            xi = x0 + dx
            yi = y0 + dy
            wx = lx if dx == 1 else 1.0 - lx
            wy = ly if dy == 1 else 1.0 - ly
            valid = (xi >= 0) & (xi < Wl) & (yi >= 0) & (yi < Hl)
            xc = jnp.clip(xi, 0, Wl - 1)
            yc = jnp.clip(yi, 0, Hl - 1)
            sampled = v_l[b_idx, yc, xc, h_idx]              # (B, Q, H, K, D)
            w = jnp.where(valid, wx * wy * a, 0.0)           # (B, Q, H, K)
            out = out + jnp.einsum('bqhk,bqhkd->bqhd', w, sampled)
    res = out.reshape(B, Q, C)
    return res @ Wo + bo


if __name__ == "__main__":
    # small config: d_model=32, n_heads=4, n_levels=2, n_points=2
    B, Q, C = 2, 8, 32
    H, K = 4, 2
    spatial_shapes = ((8, 8), (4, 4))
    L = len(spatial_shapes)
    N = sum(h * w for h, w in spatial_shapes)

    key = jax.random.PRNGKey(0)
    kq, kr, kx, kp = jax.random.split(key, 4)
    query = jax.random.normal(kq, (B, Q, C), jnp.float32)
    ref_points = jax.random.uniform(kr, (B, Q, 4), jnp.float32, 0.1, 0.9)
    input_flatten = jax.random.normal(kx, (B, N, C), jnp.float32)
    params = init_params(kp, C, H, L, K)

    out = ms_deform_attn_forward(query, ref_points, input_flatten,
                                 spatial_shapes, params, H, K)
    out = jax.block_until_ready(out)

    expected = ref_forward(query, ref_points, input_flatten,
                           spatial_shapes, params, H, K)
    assert out.shape == (B, Q, C)
    max_err = float(jnp.max(jnp.abs(out - expected)))
    # bf16 MXU operands with f32 accumulation => re-baselined tolerance
    assert max_err < 5e-2, max_err
    print("KERNEL_OK")
</pallas_src>

<mosaic_0001>
module attributes {stable_mosaic.version = 11 : i64} {
  func.func @kernel(%arg0: i32, %arg1: i32, %arg2: memref<1x8x32xf32, #tpu.memory_space<vmem>>, %arg3: memref<1x8x4xf32, #tpu.memory_space<vmem>>, %arg4: memref<1x80x32xf32, #tpu.memory_space<vmem>>, %arg5: memref<32x32xbf16, #tpu.memory_space<vmem>>, %arg6: memref<1x32xf32, #tpu.memory_space<vmem>>, %arg7: memref<32x32xf32, #tpu.memory_space<vmem>>, %arg8: memref<1x32xf32, #tpu.memory_space<vmem>>, %arg9: memref<32x16xf32, #tpu.memory_space<vmem>>, %arg10: memref<1x16xf32, #tpu.memory_space<vmem>>, %arg11: memref<32x32xbf16, #tpu.memory_space<vmem>>, %arg12: memref<1x32xf32, #tpu.memory_space<vmem>>, %arg13: memref<1x8x32xf32, #tpu.memory_space<vmem>>, %arg14: memref<80x32xbf16, #tpu.memory_space<vmem>>) attributes {dimension_semantics = [#tpu.dimension_semantics<parallel>, #tpu.dimension_semantics<arbitrary>], iteration_bounds = array<i64: 2, 1>, scalar_prefetch = 0 : i64, scratch_operands = 1 : i64, tpu.core_type = #tpu.core_type<tc>, window_params = [{transform_indices = @transform_0, window_bounds = array<i64: 1, 8, 32>}, {transform_indices = @transform_1, window_bounds = array<i64: 1, 8, 4>}, {transform_indices = @transform_2, window_bounds = array<i64: 1, 80, 32>}, {pipeline_mode = #tpu.pipeline_mode<synchronous>, transform_indices = @transform_3, window_bounds = array<i64: 32, 32>}, {pipeline_mode = #tpu.pipeline_mode<synchronous>, transform_indices = @transform_4, window_bounds = array<i64: 1, 32>}, {pipeline_mode = #tpu.pipeline_mode<synchronous>, transform_indices = @transform_5, window_bounds = array<i64: 32, 32>}, {pipeline_mode = #tpu.pipeline_mode<synchronous>, transform_indices = @transform_6, window_bounds = array<i64: 1, 32>}, {pipeline_mode = #tpu.pipeline_mode<synchronous>, transform_indices = @transform_7, window_bounds = array<i64: 32, 16>}, {pipeline_mode = #tpu.pipeline_mode<synchronous>, transform_indices = @transform_8, window_bounds = array<i64: 1, 16>}, {pipeline_mode = #tpu.pipeline_mode<synchronous>, transform_indices = @transform_9, window_bounds = array<i64: 32, 32>}, {pipeline_mode = #tpu.pipeline_mode<synchronous>, transform_indices = @transform_10, window_bounds = array<i64: 1, 32>}, {transform_indices = @transform_11, window_bounds = array<i64: 1, 8, 32>}]} {
    %c0_i32 = arith.constant 0 : i32
    %0 = arith.cmpi eq, %arg1, %c0_i32 : i32
    %1 = arith.extui %0 : i1 to i32
    %c0_i32_0 = arith.constant 0 : i32
    %2 = arith.cmpi ne, %1, %c0_i32_0 : i32
    scf.if %2 {
      %c0_180 = arith.constant 0 : index
      %c0_181 = arith.constant 0 : index
      %c0_182 = arith.constant 0 : index
      %629 = vector.load %arg4[%c0_180, %c0_181, %c0_182] : memref<1x80x32xf32, #tpu.memory_space<vmem>>, vector<1x80x32xf32>
      %630 = vector.shape_cast %629 : vector<1x80x32xf32> to vector<80x32xf32>
      %631 = arith.truncf %630 : vector<80x32xf32> to vector<80x32xbf16>
      %c0_183 = arith.constant 0 : index
      %c0_184 = arith.constant 0 : index
      %632 = vector.load %arg5[%c0_183, %c0_184] : memref<32x32xbf16, #tpu.memory_space<vmem>>, vector<32x32xbf16>
      %cst_185 = arith.constant dense<0.000000e+00> : vector<80x32xf32>
      %633 = tpu.matmul %631, %632, %cst_185 {dimension_numbers = #tpu.dot_dimension_numbers<[1], [0], [0], [1], [0, 0, 1, 1], [], []>} : vector<80x32xbf16>, vector<32x32xbf16>, vector<80x32xf32> -> vector<80x32xf32>
      %c0_186 = arith.constant 0 : index
      %c0_187 = arith.constant 0 : index
      %634 = vector.load %arg6[%c0_186, %c0_187] : memref<1x32xf32, #tpu.memory_space<vmem>>, vector<1x32xf32>
      %635 = vector.broadcast %634 : vector<1x32xf32> to vector<80x32xf32>
      %636 = arith.addf %633, %635 : vector<80x32xf32>
      %637 = arith.truncf %636 : vector<80x32xf32> to vector<80x32xbf16>
      %c0_188 = arith.constant 0 : index
      %c0_189 = arith.constant 0 : index
      %638 = vector.load %arg14[%c0_188, %c0_189] : memref<80x32xbf16, #tpu.memory_space<vmem>>, vector<80x32xbf16>
      tpu.vector_store %arg14[%c0_188, %c0_189], %637 {strides = array<i32>} : memref<80x32xbf16, #tpu.memory_space<vmem>>, vector<80x32xbf16>,
    } else {
    }
    %c0 = arith.constant 0 : index
    %c0_1 = arith.constant 0 : index
    %c0_2 = arith.constant 0 : index
    %3 = vector.load %arg2[%c0, %c0_1, %c0_2] : memref<1x8x32xf32, #tpu.memory_space<vmem>>, vector<1x8x32xf32>
    %4 = vector.shape_cast %3 : vector<1x8x32xf32> to vector<8x32xf32>
    %c0_3 = arith.constant 0 : index
    %c0_4 = arith.constant 0 : index
    %c0_5 = arith.constant 0 : index
    %5 = vector.load %arg3[%c0_3, %c0_4, %c0_5] : memref<1x8x4xf32, #tpu.memory_space<vmem>>, vector<1x8x4xf32>
    %6 = vector.shape_cast %5 : vector<1x8x4xf32> to vector<8x4xf32>
    %c0_6 = arith.constant 0 : index
    %c0_7 = arith.constant 0 : index
    %7 = vector.load %arg7[%c0_6, %c0_7] : memref<32x32xf32, #tpu.memory_space<vmem>>, vector<32x32xf32>
    %cst = arith.constant dense<0.000000e+00> : vector<8x32xf32>
    %8 = tpu.matmul %4, %7, %cst {dimension_numbers = #tpu.dot_dimension_numbers<[1], [0], [0], [1], [0, 0, 1, 1], [], []>} : vector<8x32xf32>, vector<32x32xf32>, vector<8x32xf32> -> vector<8x32xf32>
    %c0_8 = arith.constant 0 : index
    %c0_9 = arith.constant 0 : index
    %9 = vector.load %arg8[%c0_8, %c0_9] : memref<1x32xf32, #tpu.memory_space<vmem>>, vector<1x32xf32>
    %10 = vector.broadcast %9 : vector<1x32xf32> to vector<8x32xf32>
    %11 = arith.addf %8, %10 : vector<8x32xf32>
    %c0_10 = arith.constant 0 : index
    %c0_11 = arith.constant 0 : index
    %12 = vector.load %arg9[%c0_10, %c0_11] : memref<32x16xf32, #tpu.memory_space<vmem>>, vector<32x16xf32>
    %cst_12 = arith.constant dense<0.000000e+00> : vector<8x16xf32>
    %13 = tpu.matmul %4, %12, %cst_12 {dimension_numbers = #tpu.dot_dimension_numbers<[1], [0], [0], [1], [0, 0, 1, 1], [], []>} : vector<8x32xf32>, vector<32x16xf32>, vector<8x16xf32> -> vector<8x16xf32>
    %c0_13 = arith.constant 0 : index
    %c0_14 = arith.constant 0 : index
    %14 = vector.load %arg10[%c0_13, %c0_14] : memref<1x16xf32, #tpu.memory_space<vmem>>, vector<1x16xf32>
    %15 = vector.broadcast %14 : vector<1x16xf32> to vector<8x16xf32>
    %16 = arith.addf %13, %15 : vector<8x16xf32>
    %17 = vector.extract_strided_slice %6 {offsets = [0, 0], sizes = [8, 1], strides = [1, 1]} : vector<8x4xf32> to vector<8x1xf32>
    %18 = vector.extract_strided_slice %6 {offsets = [0, 1], sizes = [8, 1], strides = [1, 1]} : vector<8x4xf32> to vector<8x1xf32>
    %cst_15 = arith.constant 8.000000e+00 : f32
    %19 = vector.broadcast %cst_15 : f32 to vector<8x1xf32>
    %20 = arith.mulf %17, %19 : vector<8x1xf32>
    %cst_16 = arith.constant 5.000000e-01 : f32
    %21 = vector.broadcast %cst_16 : f32 to vector<8x1xf32>
    %22 = arith.subf %20, %21 : vector<8x1xf32>
    %cst_17 = arith.constant 8.000000e+00 : f32
    %23 = vector.broadcast %cst_17 : f32 to vector<8x1xf32>
    %24 = arith.mulf %18, %23 : vector<8x1xf32>
    %cst_18 = arith.constant 5.000000e-01 : f32
    %25 = vector.broadcast %cst_18 : f32 to vector<8x1xf32>
    %26 = arith.subf %24, %25 : vector<8x1xf32>
    %27 = tpu.iota {dimensions = array<i32: 1>} : vector<1x64xi32>
    %28 = arith.sitofp %27 : vector<1x64xi32> to vector<1x64xf32>
    %cst_19 = arith.constant 5.000000e-01 : f32
    %29 = vector.broadcast %cst_19 : f32 to vector<1x64xf32>
    %30 = arith.addf %28, %29 : vector<1x64xf32>
    %cst_20 = arith.constant 1.250000e-01 : f32
    %31 = vector.broadcast %cst_20 : f32 to vector<1x64xf32>
    %32 = arith.mulf %30, %31 : vector<1x64xf32>
    %33 = math.floor %32 : vector<1x64xf32>
    %cst_21 = arith.constant 8.000000e+00 : f32
    %34 = vector.broadcast %cst_21 : f32 to vector<1x64xf32>
    %35 = arith.mulf %33, %34 : vector<1x64xf32>
    %36 = arith.subf %28, %35 : vector<1x64xf32>
    %cst_22 = arith.constant 4.000000e+00 : f32
    %37 = vector.broadcast %cst_22 : f32 to vector<8x1xf32>
    %38 = arith.mulf %17, %37 : vector<8x1xf32>
    %cst_23 = arith.constant 5.000000e-01 : f32
    %39 = vector.broadcast %cst_23 : f32 to vector<8x1xf32>
    %40 = arith.subf %38, %39 : vector<8x1xf32>
    %cst_24 = arith.constant 4.000000e+00 : f32
    %41 = vector.broadcast %cst_24 : f32 to vector<8x1xf32>
    %42 = arith.mulf %18, %41 : vector<8x1xf32>
    %cst_25 = arith.constant 5.000000e-01 : f32
    %43 = vector.broadcast %cst_25 : f32 to vector<8x1xf32>
    %44 = arith.subf %42, %43 : vector<8x1xf32>
    %45 = tpu.iota {dimensions = array<i32: 1>} : vector<1x16xi32>
    %46 = arith.sitofp %45 : vector<1x16xi32> to vector<1x16xf32>
    %cst_26 = arith.constant 5.000000e-01 : f32
    %47 = vector.broadcast %cst_26 : f32 to vector<1x16xf32>
    %48 = arith.addf %46, %47 : vector<1x16xf32>
    %cst_27 = arith.constant 2.500000e-01 : f32
    %49 = vector.broadcast %cst_27 : f32 to vector<1x16xf32>
    %50 = arith.mulf %48, %49 : vector<1x16xf32>
    %51 = math.floor %50 : vector<1x16xf32>
    %cst_28 = arith.constant 4.000000e+00 : f32
    %52 = vector.broadcast %cst_28 : f32 to vector<1x16xf32>
    %53 = arith.mulf %51, %52 : vector<1x16xf32>
    %54 = arith.subf %46, %53 : vector<1x16xf32>
    %55 = vector.extract_strided_slice %16 {offsets = [0, 0], sizes = [8, 4], strides = [1, 1]} : vector<8x16xf32> to vector<8x4xf32>
    %cst_29 = arith.constant dense<0xFF800000> : vector<8xf32>
    %56 = vector.multi_reduction <maximumf>, %55, %cst_29 [1] : vector<8x4xf32> to vector<8xf32>
    %57 = vector.shape_cast %56 : vector<8xf32> to vector<8x1xf32>
    %58 = vector.broadcast %57 : vector<8x1xf32> to vector<8x4xf32>
    %59 = arith.subf %55, %58 : vector<8x4xf32>
    %60 = math.exp %59 : vector<8x4xf32>
    %cst_30 = arith.constant dense<0.000000e+00> : vector<8xf32>
    %61 = vector.multi_reduction <add>, %60, %cst_30 [1] : vector<8x4xf32> to vector<8xf32>
    %62 = vector.shape_cast %61 : vector<8xf32> to vector<8x1xf32>
    %cst_31 = arith.constant 1.000000e+00 : f32
    %63 = vector.broadcast %cst_31 : f32 to vector<8x1xf32>
    %64 = arith.divf %63, %62 : vector<8x1xf32>
    %65 = vector.broadcast %64 : vector<8x1xf32> to vector<8x4xf32>
    %66 = arith.mulf %60, %65 : vector<8x4xf32>
    %cst_32 = arith.constant 0.000000e+00 : f32
    %67 = vector.broadcast %cst_32 : f32 to vector<8x8xf32>
    %cst_33 = arith.constant 0.000000e+00 : f32
    %68 = vector.broadcast %cst_33 : f32 to vector<8x64xf32>
    %69 = vector.extract_strided_slice %11 {offsets = [0, 0], sizes = [8, 1], strides = [1, 1]} : vector<8x32xf32> to vector<8x1xf32>
    %cst_34 = arith.constant 1.000000e+00 : f32
    %70 = vector.broadcast %cst_34 : f32 to vector<8x1xf32>
    %71 = arith.mulf %69, %70 : vector<8x1xf32>
    %72 = arith.addf %22, %71 : vector<8x1xf32>
    %73 = vector.extract_strided_slice %11 {offsets = [0, 1], sizes = [8, 1], strides = [1, 1]} : vector<8x32xf32> to vector<8x1xf32>
    %cst_35 = arith.constant 1.000000e+00 : f32
    %74 = vector.broadcast %cst_35 : f32 to vector<8x1xf32>
    %75 = arith.mulf %73, %74 : vector<8x1xf32>
    %76 = arith.addf %26, %75 : vector<8x1xf32>
    %77 = vector.extract_strided_slice %66 {offsets = [0, 0], sizes = [8, 1], strides = [1, 1]} : vector<8x4xf32> to vector<8x1xf32>
    %78 = vector.broadcast %72 : vector<8x1xf32> to vector<8x64xf32>
    %79 = vector.broadcast %36 : vector<1x64xf32> to vector<8x64xf32>
    %80 = arith.subf %78, %79 : vector<8x64xf32>
    %81 = math.absf %80 : vector<8x64xf32>
    %cst_36 = arith.constant 1.000000e+00 : f32
    %82 = vector.broadcast %cst_36 : f32 to vector<8x64xf32>
    %83 = arith.subf %82, %81 : vector<8x64xf32>
    %cst_37 = arith.constant 0.000000e+00 : f32
    %84 = vector.broadcast %cst_37 : f32 to vector<8x64xf32>
    %85 = arith.maximumf %83, %84 : vector<8x64xf32>
    %86 = vector.broadcast %76 : vector<8x1xf32> to vector<8x64xf32>
    %87 = vector.broadcast %33 : vector<1x64xf32> to vector<8x64xf32>
    %88 = arith.subf %86, %87 : vector<8x64xf32>
    %89 = math.absf %88 : vector<8x64xf32>
    %cst_38 = arith.constant 1.000000e+00 : f32
    %90 = vector.broadcast %cst_38 : f32 to vector<8x64xf32>
    %91 = arith.subf %90, %89 : vector<8x64xf32>
    %cst_39 = arith.constant 0.000000e+00 : f32
    %92 = vector.broadcast %cst_39 : f32 to vector<8x64xf32>
    %93 = arith.maximumf %91, %92 : vector<8x64xf32>
    %94 = vector.broadcast %77 : vector<8x1xf32> to vector<8x64xf32>
    %95 = arith.mulf %94, %93 : vector<8x64xf32>
    %96 = arith.mulf %95, %85 : vector<8x64xf32>
    %97 = arith.addf %68, %96 : vector<8x64xf32>
    %98 = vector.extract_strided_slice %11 {offsets = [0, 2], sizes = [8, 1], strides = [1, 1]} : vector<8x32xf32> to vector<8x1xf32>
    %cst_40 = arith.constant 1.000000e+00 : f32
    %99 = vector.broadcast %cst_40 : f32 to vector<8x1xf32>
    %100 = arith.mulf %98, %99 : vector<8x1xf32>
    %101 = arith.addf %22, %100 : vector<8x1xf32>
    %102 = vector.extract_strided_slice %11 {offsets = [0, 3], sizes = [8, 1], strides = [1, 1]} : vector<8x32xf32> to vector<8x1xf32>
    %cst_41 = arith.constant 1.000000e+00 : f32
    %103 = vector.broadcast %cst_41 : f32 to vector<8x1xf32>
    %104 = arith.mulf %102, %103 : vector<8x1xf32>
    %105 = arith.addf %26, %104 : vector<8x1xf32>
    %106 = vector.extract_strided_slice %66 {offsets = [0, 1], sizes = [8, 1], strides = [1, 1]} : vector<8x4xf32> to vector<8x1xf32>
    %107 = vector.broadcast %101 : vector<8x1xf32> to vector<8x64xf32>
    %108 = vector.broadcast %36 : vector<1x64xf32> to vector<8x64xf32>
    %109 = arith.subf %107, %108 : vector<8x64xf32>
    %110 = math.absf %109 : vector<8x64xf32>
    %cst_42 = arith.constant 1.000000e+00 : f32
    %111 = vector.broadcast %cst_42 : f32 to vector<8x64xf32>
    %112 = arith.subf %111, %110 : vector<8x64xf32>
    %cst_43 = arith.constant 0.000000e+00 : f32
    %113 = vector.broadcast %cst_43 : f32 to vector<8x64xf32>
    %114 = arith.maximumf %112, %113 : vector<8x64xf32>
    %115 = vector.broadcast %105 : vector<8x1xf32> to vector<8x64xf32>
    %116 = vector.broadcast %33 : vector<1x64xf32> to vector<8x64xf32>
    %117 = arith.subf %115, %116 : vector<8x64xf32>
    %118 = math.absf %117 : vector<8x64xf32>
    %cst_44 = arith.constant 1.000000e+00 : f32
    %119 = vector.broadcast %cst_44 : f32 to vector<8x64xf32>
    %120 = arith.subf %119, %118 : vector<8x64xf32>
    %cst_45 = arith.constant 0.000000e+00 : f32
    %121 = vector.broadcast %cst_45 : f32 to vector<8x64xf32>
    %122 = arith.maximumf %120, %121 : vector<8x64xf32>
    %123 = vector.broadcast %106 : vector<8x1xf32> to vector<8x64xf32>
    %124 = arith.mulf %123, %122 : vector<8x64xf32>
    %125 = arith.mulf %124, %114 : vector<8x64xf32>
    %126 = arith.addf %97, %125 : vector<8x64xf32>
    %c0_46 = arith.constant 0 : index
    %c0_47 = arith.constant 0 : index
    %127 = vector.load %arg14[%c0_46, %c0_47] : memref<80x32xbf16, #tpu.memory_space<vmem>>, vector<64x32xbf16>
    %128 = vector.extract_strided_slice %127 {offsets = [0, 0], sizes = [64, 8], strides = [1, 1]} : vector<64x32xbf16> to vector<64x8xbf16>
    %129 = arith.truncf %126 : vector<8x64xf32> to vector<8x64xbf16>
    %cst_48 = arith.constant dense<0.000000e+00> : vector<8x8xf32>
    %130 = tpu.matmul %129, %128, %cst_48 {dimension_numbers = #tpu.dot_dimension_numbers<[1], [0], [0], [1], [0, 0, 1, 1], [], []>} : vector<8x64xbf16>, vector<64x8xbf16>, vector<8x8xf32> -> vector<8x8xf32>
    %131 = arith.addf %67, %130 : vector<8x8xf32>
    %cst_49 = arith.constant 0.000000e+00 : f32
    %132 = vector.broadcast %cst_49 : f32 to vector<8x16xf32>
    %133 = vector.extract_strided_slice %11 {offsets = [0, 4], sizes = [8, 1], strides = [1, 1]} : vector<8x32xf32> to vector<8x1xf32>
    %cst_50 = arith.constant 5.000000e-01 : f32
    %134 = vector.broadcast %cst_50 : f32 to vector<8x1xf32>
    %135 = arith.mulf %133, %134 : vector<8x1xf32>
    %136 = arith.addf %40, %135 : vector<8x1xf32>
    %137 = vector.extract_strided_slice %11 {offsets = [0, 5], sizes = [8, 1], strides = [1, 1]} : vector<8x32xf32> to vector<8x1xf32>
    %cst_51 = arith.constant 5.000000e-01 : f32
    %138 = vector.broadcast %cst_51 : f32 to vector<8x1xf32>
    %139 = arith.mulf %137, %138 : vector<8x1xf32>
    %140 = arith.addf %44, %139 : vector<8x1xf32>
    %141 = vector.extract_strided_slice %66 {offsets = [0, 2], sizes = [8, 1], strides = [1, 1]} : vector<8x4xf32> to vector<8x1xf32>
    %142 = vector.broadcast %136 : vector<8x1xf32> to vector<8x16xf32>
    %143 = vector.broadcast %54 : vector<1x16xf32> to vector<8x16xf32>
    %144 = arith.subf %142, %143 : vector<8x16xf32>
    %145 = math.absf %144 : vector<8x16xf32>
    %cst_52 = arith.constant 1.000000e+00 : f32
    %146 = vector.broadcast %cst_52 : f32 to vector<8x16xf32>
    %147 = arith.subf %146, %145 : vector<8x16xf32>
    %cst_53 = arith.constant 0.000000e+00 : f32
    %148 = vector.broadcast %cst_53 : f32 to vector<8x16xf32>
    %149 = arith.maximumf %147, %148 : vector<8x16xf32>
    %150 = vector.broadcast %140 : vector<8x1xf32> to vector<8x16xf32>
    %151 = vector.broadcast %51 : vector<1x16xf32> to vector<8x16xf32>
    %152 = arith.subf %150, %151 : vector<8x16xf32>
    %153 = math.absf %152 : vector<8x16xf32>
    %cst_54 = arith.constant 1.000000e+00 : f32
    %154 = vector.broadcast %cst_54 : f32 to vector<8x16xf32>
    %155 = arith.subf %154, %153 : vector<8x16xf32>
    %cst_55 = arith.constant 0.000000e+00 : f32
    %156 = vector.broadcast %cst_55 : f32 to vector<8x16xf32>
    %157 = arith.maximumf %155, %156 : vector<8x16xf32>
    %158 = vector.broadcast %141 : vector<8x1xf32> to vector<8x16xf32>
    %159 = arith.mulf %158, %157 : vector<8x16xf32>
    %160 = arith.mulf %159, %149 : vector<8x16xf32>
    %161 = arith.addf %132, %160 : vector<8x16xf32>
    %162 = vector.extract_strided_slice %11 {offsets = [0, 6], sizes = [8, 1], strides = [1, 1]} : vector<8x32xf32> to vector<8x1xf32>
    %cst_56 = arith.constant 5.000000e-01 : f32
    %163 = vector.broadcast %cst_56 : f32 to vector<8x1xf32>
    %164 = arith.mulf %162, %163 : vector<8x1xf32>
    %165 = arith.addf %40, %164 : vector<8x1xf32>
    %166 = vector.extract_strided_slice %11 {offsets = [0, 7], sizes = [8, 1], strides = [1, 1]} : vector<8x32xf32> to vector<8x1xf32>
    %cst_57 = arith.constant 5.000000e-01 : f32
    %167 = vector.broadcast %cst_57 : f32 to vector<8x1xf32>
    %168 = arith.mulf %166, %167 : vector<8x1xf32>
    %169 = arith.addf %44, %168 : vector<8x1xf32>
    %170 = vector.extract_strided_slice %66 {offsets = [0, 3], sizes = [8, 1], strides = [1, 1]} : vector<8x4xf32> to vector<8x1xf32>
    %171 = vector.broadcast %165 : vector<8x1xf32> to vector<8x16xf32>
    %172 = vector.broadcast %54 : vector<1x16xf32> to vector<8x16xf32>
    %173 = arith.subf %171, %172 : vector<8x16xf32>
    %174 = math.absf %173 : vector<8x16xf32>
    %cst_58 = arith.constant 1.000000e+00 : f32
    %175 = vector.broadcast %cst_58 : f32 to vector<8x16xf32>
    %176 = arith.subf %175, %174 : vector<8x16xf32>
    %cst_59 = arith.constant 0.000000e+00 : f32
    %177 = vector.broadcast %cst_59 : f32 to vector<8x16xf32>
    %178 = arith.maximumf %176, %177 : vector<8x16xf32>
    %179 = vector.broadcast %169 : vector<8x1xf32> to vector<8x16xf32>
    %180 = vector.broadcast %51 : vector<1x16xf32> to vector<8x16xf32>
    %181 = arith.subf %179, %180 : vector<8x16xf32>
    %182 = math.absf %181 : vector<8x16xf32>
    %cst_60 = arith.constant 1.000000e+00 : f32
    %183 = vector.broadcast %cst_60 : f32 to vector<8x16xf32>
    %184 = arith.subf %183, %182 : vector<8x16xf32>
    %cst_61 = arith.constant 0.000000e+00 : f32
    %185 = vector.broadcast %cst_61 : f32 to vector<8x16xf32>
    %186 = arith.maximumf %184, %185 : vector<8x16xf32>
    %187 = vector.broadcast %170 : vector<8x1xf32> to vector<8x16xf32>
    %188 = arith.mulf %187, %186 : vector<8x16xf32>
    %189 = arith.mulf %188, %178 : vector<8x16xf32>
    %190 = arith.addf %161, %189 : vector<8x16xf32>
    %c64 = arith.constant 64 : index
    %c0_62 = arith.constant 0 : index
    %191 = vector.load %arg14[%c64, %c0_62] : memref<80x32xbf16, #tpu.memory_space<vmem>>, vector<16x32xbf16>
    %192 = vector.extract_strided_slice %191 {offsets = [0, 0], sizes = [16, 8], strides = [1, 1]} : vector<16x32xbf16> to vector<16x8xbf16>
    %193 = arith.truncf %190 : vector<8x16xf32> to vector<8x16xbf16>
    %cst_63 = arith.constant dense<0.000000e+00> : vector<8x8xf32>
    %194 = tpu.matmul %193, %192, %cst_63 {dimension_numbers = #tpu.dot_dimension_numbers<[1], [0], [0], [1], [0, 0, 1, 1], [], []>} : vector<8x16xbf16>, vector<16x8xbf16>, vector<8x8xf32> -> vector<8x8xf32>
    %195 = arith.addf %131, %194 : vector<8x8xf32>
    %196 = vector.extract_strided_slice %16 {offsets = [0, 4], sizes = [8, 4], strides = [1, 1]} : vector<8x16xf32> to vector<8x4xf32>
    %cst_64 = arith.constant dense<0xFF800000> : vector<8xf32>
    %197 = vector.multi_reduction <maximumf>, %196, %cst_64 [1] : vector<8x4xf32> to vector<8xf32>
    %198 = vector.shape_cast %197 : vector<8xf32> to vector<8x1xf32>
    %199 = vector.broadcast %198 : vector<8x1xf32> to vector<8x4xf32>
    %200 = arith.subf %196, %199 : vector<8x4xf32>
    %201 = math.exp %200 : vector<8x4xf32>
    %cst_65 = arith.constant dense<0.000000e+00> : vector<8xf32>
    %202 = vector.multi_reduction <add>, %201, %cst_65 [1] : vector<8x4xf32> to vector<8xf32>
    %203 = vector.shape_cast %202 : vector<8xf32> to vector<8x1xf32>
    %cst_66 = arith.constant 1.000000e+00 : f32
    %204 = vector.broadcast %cst_66 : f32 to vector<8x1xf32>
    %205 = arith.divf %204, %203 : vector<8x1xf32>
    %206 = vector.broadcast %205 : vector<8x1xf32> to vector<8x4xf32>
    %207 = arith.mulf %201, %206 : vector<8x4xf32>
    %cst_67 = arith.constant 0.000000e+00 : f32
    %208 = vector.broadcast %cst_67 : f32 to vector<8x8xf32>
    %cst_68 = arith.constant 0.000000e+00 : f32
    %209 = vector.broadcast %cst_68 : f32 to vector<8x64xf32>
    %210 = vector.extract_strided_slice %11 {offsets = [0, 8], sizes = [8, 1], strides = [1, 1]} : vector<8x32xf32> to vector<8x1xf32>
    %cst_69 = arith.constant 1.000000e+00 : f32
    %211 = vector.broadcast %cst_69 : f32 to vector<8x1xf32>
    %212 = arith.mulf %210, %211 : vector<8x1xf32>
    %213 = arith.addf %22, %212 : vector<8x1xf32>
    %214 = vector.extract_strided_slice %11 {offsets = [0, 9], sizes = [8, 1], strides = [1, 1]} : vector<8x32xf32> to vector<8x1xf32>
    %cst_70 = arith.constant 1.000000e+00 : f32
    %215 = vector.broadcast %cst_70 : f32 to vector<8x1xf32>
    %216 = arith.mulf %214, %215 : vector<8x1xf32>
    %217 = arith.addf %26, %216 : vector<8x1xf32>
    %218 = vector.extract_strided_slice %207 {offsets = [0, 0], sizes = [8, 1], strides = [1, 1]} : vector<8x4xf32> to vector<8x1xf32>
    %219 = vector.broadcast %213 : vector<8x1xf32> to vector<8x64xf32>
    %220 = vector.broadcast %36 : vector<1x64xf32> to vector<8x64xf32>
    %221 = arith.subf %219, %220 : vector<8x64xf32>
    %222 = math.absf %221 : vector<8x64xf32>
    %cst_71 = arith.constant 1.000000e+00 : f32
    %223 = vector.broadcast %cst_71 : f32 to vector<8x64xf32>
    %224 = arith.subf %223, %222 : vector<8x64xf32>
    %cst_72 = arith.constant 0.000000e+00 : f32
    %225 = vector.broadcast %cst_72 : f32 to vector<8x64xf32>
    %226 = arith.maximumf %224, %225 : vector<8x64xf32>
    %227 = vector.broadcast %217 : vector<8x1xf32> to vector<8x64xf32>
    %228 = vector.broadcast %33 : vector<1x64xf32> to vector<8x64xf32>
    %229 = arith.subf %227, %228 : vector<8x64xf32>
    %230 = math.absf %229 : vector<8x64xf32>
    %cst_73 = arith.constant 1.000000e+00 : f32
    %231 = vector.broadcast %cst_73 : f32 to vector<8x64xf32>
    %232 = arith.subf %231, %230 : vector<8x64xf32>
    %cst_74 = arith.constant 0.000000e+00 : f32
    %233 = vector.broadcast %cst_74 : f32 to vector<8x64xf32>
    %234 = arith.maximumf %232, %233 : vector<8x64xf32>
    %235 = vector.broadcast %218 : vector<8x1xf32> to vector<8x64xf32>
    %236 = arith.mulf %235, %234 : vector<8x64xf32>
    %237 = arith.mulf %236, %226 : vector<8x64xf32>
    %238 = arith.addf %209, %237 : vector<8x64xf32>
    %239 = vector.extract_strided_slice %11 {offsets = [0, 10], sizes = [8, 1], strides = [1, 1]} : vector<8x32xf32> to vector<8x1xf32>
    %cst_75 = arith.constant 1.000000e+00 : f32
    %240 = vector.broadcast %cst_75 : f32 to vector<8x1xf32>
    %241 = arith.mulf %239, %240 : vector<8x1xf32>
    %242 = arith.addf %22, %241 : vector<8x1xf32>
    %243 = vector.extract_strided_slice %11 {offsets = [0, 11], sizes = [8, 1], strides = [1, 1]} : vector<8x32xf32> to vector<8x1xf32>
    %cst_76 = arith.constant 1.000000e+00 : f32
    %244 = vector.broadcast %cst_76 : f32 to vector<8x1xf32>
    %245 = arith.mulf %243, %244 : vector<8x1xf32>
    %246 = arith.addf %26, %245 : vector<8x1xf32>
    %247 = vector.extract_strided_slice %207 {offsets = [0, 1], sizes = [8, 1], strides = [1, 1]} : vector<8x4xf32> to vector<8x1xf32>
    %248 = vector.broadcast %242 : vector<8x1xf32> to vector<8x64xf32>
    %249 = vector.broadcast %36 : vector<1x64xf32> to vector<8x64xf32>
    %250 = arith.subf %248, %249 : vector<8x64xf32>
    %251 = math.absf %250 : vector<8x64xf32>
    %cst_77 = arith.constant 1.000000e+00 : f32
    %252 = vector.broadcast %cst_77 : f32 to vector<8x64xf32>
    %253 = arith.subf %252, %251 : vector<8x64xf32>
    %cst_78 = arith.constant 0.000000e+00 : f32
    %254 = vector.broadcast %cst_78 : f32 to vector<8x64xf32>
    %255 = arith.maximumf %253, %254 : vector<8x64xf32>
    %256 = vector.broadcast %246 : vector<8x1xf32> to vector<8x64xf32>
    %257 = vector.broadcast %33 : vector<1x64xf32> to vector<8x64xf32>
    %258 = arith.subf %256, %257 : vector<8x64xf32>
    %259 = math.absf %258 : vector<8x64xf32>
    %cst_79 = arith.constant 1.000000e+00 : f32
    %260 = vector.broadcast %cst_79 : f32 to vector<8x64xf32>
    %261 = arith.subf %260, %259 : vector<8x64xf32>
    %cst_80 = arith.constant 0.000000e+00 : f32
    %262 = vector.broadcast %cst_80 : f32 to vector<8x64xf32>
    %263 = arith.maximumf %261, %262 : vector<8x64xf32>
    %264 = vector.broadcast %247 : vector<8x1xf32> to vector<8x64xf32>
    %265 = arith.mulf %264, %263 : vector<8x64xf32>
    %266 = arith.mulf %265, %255 : vector<8x64xf32>
    %267 = arith.addf %238, %266 : vector<8x64xf32>
    %c0_81 = arith.constant 0 : index
    %c0_82 = arith.constant 0 : index
    %268 = vector.load %arg14[%c0_81, %c0_82] : memref<80x32xbf16, #tpu.memory_space<vmem>>, vector<64x32xbf16>
    %269 = vector.extract_strided_slice %268 {offsets = [0, 8], sizes = [64, 8], strides = [1, 1]} : vector<64x32xbf16> to vector<64x8xbf16>
    %270 = arith.truncf %267 : vector<8x64xf32> to vector<8x64xbf16>
    %cst_83 = arith.constant dense<0.000000e+00> : vector<8x8xf32>
    %271 = tpu.matmul %270, %269, %cst_83 {dimension_numbers = #tpu.dot_dimension_numbers<[1], [0], [0], [1], [0, 0, 1, 1], [], []>} : vector<8x64xbf16>, vector<64x8xbf16>, vector<8x8xf32> -> vector<8x8xf32>
    %272 = arith.addf %208, %271 : vector<8x8xf32>
    %cst_84 = arith.constant 0.000000e+00 : f32
    %273 = vector.broadcast %cst_84 : f32 to vector<8x16xf32>
    %274 = vector.extract_strided_slice %11 {offsets = [0, 12], sizes = [8, 1], strides = [1, 1]} : vector<8x32xf32> to vector<8x1xf32>
    %cst_85 = arith.constant 5.000000e-01 : f32
    %275 = vector.broadcast %cst_85 : f32 to vector<8x1xf32>
    %276 = arith.mulf %274, %275 : vector<8x1xf32>
    %277 = arith.addf %40, %276 : vector<8x1xf32>
    %278 = vector.extract_strided_slice %11 {offsets = [0, 13], sizes = [8, 1], strides = [1, 1]} : vector<8x32xf32> to vector<8x1xf32>
    %cst_86 = arith.constant 5.000000e-01 : f32
    %279 = vector.broadcast %cst_86 : f32 to vector<8x1xf32>
    %280 = arith.mulf %278, %279 : vector<8x1xf32>
    %281 = arith.addf %44, %280 : vector<8x1xf32>
    %282 = vector.extract_strided_slice %207 {offsets = [0, 2], sizes = [8, 1], strides = [1, 1]} : vector<8x4xf32> to vector<8x1xf32>
    %283 = vector.broadcast %277 : vector<8x1xf32> to vector<8x16xf32>
    %284 = vector.broadcast %54 : vector<1x16xf32> to vector<8x16xf32>
    %285 = arith.subf %283, %284 : vector<8x16xf32>
    %286 = math.absf %285 : vector<8x16xf32>
    %cst_87 = arith.constant 1.000000e+00 : f32
    %287 = vector.broadcast %cst_87 : f32 to vector<8x16xf32>
    %288 = arith.subf %287, %286 : vector<8x16xf32>
    %cst_88 = arith.constant 0.000000e+00 : f32
    %289 = vector.broadcast %cst_88 : f32 to vector<8x16xf32>
    %290 = arith.maximumf %288, %289 : vector<8x16xf32>
    %291 = vector.broadcast %281 : vector<8x1xf32> to vector<8x16xf32>
    %292 = vector.broadcast %51 : vector<1x16xf32> to vector<8x16xf32>
    %293 = arith.subf %291, %292 : vector<8x16xf32>
    %294 = math.absf %293 : vector<8x16xf32>
    %cst_89 = arith.constant 1.000000e+00 : f32
    %295 = vector.broadcast %cst_89 : f32 to vector<8x16xf32>
    %296 = arith.subf %295, %294 : vector<8x16xf32>
    %cst_90 = arith.constant 0.000000e+00 : f32
    %297 = vector.broadcast %cst_90 : f32 to vector<8x16xf32>
    %298 = arith.maximumf %296, %297 : vector<8x16xf32>
    %299 = vector.broadcast %282 : vector<8x1xf32> to vector<8x16xf32>
    %300 = arith.mulf %299, %298 : vector<8x16xf32>
    %301 = arith.mulf %300, %290 : vector<8x16xf32>
    %302 = arith.addf %273, %301 : vector<8x16xf32>
    %303 = vector.extract_strided_slice %11 {offsets = [0, 14], sizes = [8, 1], strides = [1, 1]} : vector<8x32xf32> to vector<8x1xf32>
    %cst_91 = arith.constant 5.000000e-01 : f32
    %304 = vector.broadcast %cst_91 : f32 to vector<8x1xf32>
    %305 = arith.mulf %303, %304 : vector<8x1xf32>
    %306 = arith.addf %40, %305 : vector<8x1xf32>
    %307 = vector.extract_strided_slice %11 {offsets = [0, 15], sizes = [8, 1], strides = [1, 1]} : vector<8x32xf32> to vector<8x1xf32>
    %cst_92 = arith.constant 5.000000e-01 : f32
    %308 = vector.broadcast %cst_92 : f32 to vector<8x1xf32>
    %309 = arith.mulf %307, %308 : vector<8x1xf32>
    %310 = arith.addf %44, %309 : vector<8x1xf32>
    %311 = vector.extract_strided_slice %207 {offsets = [0, 3], sizes = [8, 1], strides = [1, 1]} : vector<8x4xf32> to vector<8x1xf32>
    %312 = vector.broadcast %306 : vector<8x1xf32> to vector<8x16xf32>
    %313 = vector.broadcast %54 : vector<1x16xf32> to vector<8x16xf32>
    %314 = arith.subf %312, %313 : vector<8x16xf32>
    %315 = math.absf %314 : vector<8x16xf32>
    %cst_93 = arith.constant 1.000000e+00 : f32
    %316 = vector.broadcast %cst_93 : f32 to vector<8x16xf32>
    %317 = arith.subf %316, %315 : vector<8x16xf32>
    %cst_94 = arith.constant 0.000000e+00 : f32
    %318 = vector.broadcast %cst_94 : f32 to vector<8x16xf32>
    %319 = arith.maximumf %317, %318 : vector<8x16xf32>
    %320 = vector.broadcast %310 : vector<8x1xf32> to vector<8x16xf32>
    %321 = vector.broadcast %51 : vector<1x16xf32> to vector<8x16xf32>
    %322 = arith.subf %320, %321 : vector<8x16xf32>
    %323 = math.absf %322 : vector<8x16xf32>
    %cst_95 = arith.constant 1.000000e+00 : f32
    %324 = vector.broadcast %cst_95 : f32 to vector<8x16xf32>
    %325 = arith.subf %324, %323 : vector<8x16xf32>
    %cst_96 = arith.constant 0.000000e+00 : f32
    %326 = vector.broadcast %cst_96 : f32 to vector<8x16xf32>
    %327 = arith.maximumf %325, %326 : vector<8x16xf32>
    %328 = vector.broadcast %311 : vector<8x1xf32> to vector<8x16xf32>
    %329 = arith.mulf %328, %327 : vector<8x16xf32>
    %330 = arith.mulf %329, %319 : vector<8x16xf32>
    %331 = arith.addf %302, %330 : vector<8x16xf32>
    %c64_97 = arith.constant 64 : index
    %c0_98 = arith.constant 0 : index
    %332 = vector.load %arg14[%c64_97, %c0_98] : memref<80x32xbf16, #tpu.memory_space<vmem>>, vector<16x32xbf16>
    %333 = vector.extract_strided_slice %332 {offsets = [0, 8], sizes = [16, 8], strides = [1, 1]} : vector<16x32xbf16> to vector<16x8xbf16>
    %334 = arith.truncf %331 : vector<8x16xf32> to vector<8x16xbf16>
    %cst_99 = arith.constant dense<0.000000e+00> : vector<8x8xf32>
    %335 = tpu.matmul %334, %333, %cst_99 {dimension_numbers = #tpu.dot_dimension_numbers<[1], [0], [0], [1], [0, 0, 1, 1], [], []>} : vector<8x16xbf16>, vector<16x8xbf16>, vector<8x8xf32> -> vector<8x8xf32>
    %336 = arith.addf %272, %335 : vector<8x8xf32>
    %337 = vector.extract_strided_slice %16 {offsets = [0, 8], sizes = [8, 4], strides = [1, 1]} : vector<8x16xf32> to vector<8x4xf32>
    %cst_100 = arith.constant dense<0xFF800000> : vector<8xf32>
    %338 = vector.multi_reduction <maximumf>, %337, %cst_100 [1] : vector<8x4xf32> to vector<8xf32>
    %339 = vector.shape_cast %338 : vector<8xf32> to vector<8x1xf32>
    %340 = vector.broadcast %339 : vector<8x1xf32> to vector<8x4xf32>
    %341 = arith.subf %337, %340 : vector<8x4xf32>
    %342 = math.exp %341 : vector<8x4xf32>
    %cst_101 = arith.constant dense<0.000000e+00> : vector<8xf32>
    %343 = vector.multi_reduction <add>, %342, %cst_101 [1] : vector<8x4xf32> to vector<8xf32>
    %344 = vector.shape_cast %343 : vector<8xf32> to vector<8x1xf32>
    %cst_102 = arith.constant 1.000000e+00 : f32
    %345 = vector.broadcast %cst_102 : f32 to vector<8x1xf32>
    %346 = arith.divf %345, %344 : vector<8x1xf32>
    %347 = vector.broadcast %346 : vector<8x1xf32> to vector<8x4xf32>
    %348 = arith.mulf %342, %347 : vector<8x4xf32>
    %cst_103 = arith.constant 0.000000e+00 : f32
    %349 = vector.broadcast %cst_103 : f32 to vector<8x8xf32>
    %cst_104 = arith.constant 0.000000e+00 : f32
    %350 = vector.broadcast %cst_104 : f32 to vector<8x64xf32>
    %351 = vector.extract_strided_slice %11 {offsets = [0, 16], sizes = [8, 1], strides = [1, 1]} : vector<8x32xf32> to vector<8x1xf32>
    %cst_105 = arith.constant 1.000000e+00 : f32
    %352 = vector.broadcast %cst_105 : f32 to vector<8x1xf32>
    %353 = arith.mulf %351, %352 : vector<8x1xf32>
    %354 = arith.addf %22, %353 : vector<8x1xf32>
    %355 = vector.extract_strided_slice %11 {offsets = [0, 17], sizes = [8, 1], strides = [1, 1]} : vector<8x32xf32> to vector<8x1xf32>
    %cst_106 = arith.constant 1.000000e+00 : f32
    %356 = vector.broadcast %cst_106 : f32 to vector<8x1xf32>
    %357 = arith.mulf %355, %356 : vector<8x1xf32>
    %358 = arith.addf %26, %357 : vector<8x1xf32>
    %359 = vector.extract_strided_slice %348 {offsets = [0, 0], sizes = [8, 1], strides = [1, 1]} : vector<8x4xf32> to vector<8x1xf32>
    %360 = vector.broadcast %354 : vector<8x1xf32> to vector<8x64xf32>
    %361 = vector.broadcast %36 : vector<1x64xf32> to vector<8x64xf32>
    %362 = arith.subf %360, %361 : vector<8x64xf32>
    %363 = math.absf %362 : vector<8x64xf32>
    %cst_107 = arith.constant 1.000000e+00 : f32
    %364 = vector.broadcast %cst_107 : f32 to vector<8x64xf32>
    %365 = arith.subf %364, %363 : vector<8x64xf32>
    %cst_108 = arith.constant 0.000000e+00 : f32
    %366 = vector.broadcast %cst_108 : f32 to vector<8x64xf32>
    %367 = arith.maximumf %365, %366 : vector<8x64xf32>
    %368 = vector.broadcast %358 : vector<8x1xf32> to vector<8x64xf32>
    %369 = vector.broadcast %33 : vector<1x64xf32> to vector<8x64xf32>
    %370 = arith.subf %368, %369 : vector<8x64xf32>
    %371 = math.absf %370 : vector<8x64xf32>
    %cst_109 = arith.constant 1.000000e+00 : f32
    %372 = vector.broadcast %cst_109 : f32 to vector<8x64xf32>
    %373 = arith.subf %372, %371 : vector<8x64xf32>
    %cst_110 = arith.constant 0.000000e+00 : f32
    %374 = vector.broadcast %cst_110 : f32 to vector<8x64xf32>
    %375 = arith.maximumf %373, %374 : vector<8x64xf32>
    %376 = vector.broadcast %359 : vector<8x1xf32> to vector<8x64xf32>
    %377 = arith.mulf %376, %375 : vector<8x64xf32>
    %378 = arith.mulf %377, %367 : vector<8x64xf32>
    %379 = arith.addf %350, %378 : vector<8x64xf32>
    %380 = vector.extract_strided_slice %11 {offsets = [0, 18], sizes = [8, 1], strides = [1, 1]} : vector<8x32xf32> to vector<8x1xf32>
    %cst_111 = arith.constant 1.000000e+00 : f32
    %381 = vector.broadcast %cst_111 : f32 to vector<8x1xf32>
    %382 = arith.mulf %380, %381 : vector<8x1xf32>
    %383 = arith.addf %22, %382 : vector<8x1xf32>
    %384 = vector.extract_strided_slice %11 {offsets = [0, 19], sizes = [8, 1], strides = [1, 1]} : vector<8x32xf32> to vector<8x1xf32>
    %cst_112 = arith.constant 1.000000e+00 : f32
    %385 = vector.broadcast %cst_112 : f32 to vector<8x1xf32>
    %386 = arith.mulf %384, %385 : vector<8x1xf32>
    %387 = arith.addf %26, %386 : vector<8x1xf32>
    %388 = vector.extract_strided_slice %348 {offsets = [0, 1], sizes = [8, 1], strides = [1, 1]} : vector<8x4xf32> to vector<8x1xf32>
    %389 = vector.broadcast %383 : vector<8x1xf32> to vector<8x64xf32>
    %390 = vector.broadcast %36 : vector<1x64xf32> to vector<8x64xf32>
    %391 = arith.subf %389, %390 : vector<8x64xf32>
    %392 = math.absf %391 : vector<8x64xf32>
    %cst_113 = arith.constant 1.000000e+00 : f32
    %393 = vector.broadcast %cst_113 : f32 to vector<8x64xf32>
    %394 = arith.subf %393, %392 : vector<8x64xf32>
    %cst_114 = arith.constant 0.000000e+00 : f32
    %395 = vector.broadcast %cst_114 : f32 to vector<8x64xf32>
    %396 = arith.maximumf %394, %395 : vector<8x64xf32>
    %397 = vector.broadcast %387 : vector<8x1xf32> to vector<8x64xf32>
    %398 = vector.broadcast %33 : vector<1x64xf32> to vector<8x64xf32>
    %399 = arith.subf %397, %398 : vector<8x64xf32>
    %400 = math.absf %399 : vector<8x64xf32>
    %cst_115 = arith.constant 1.000000e+00 : f32
    %401 = vector.broadcast %cst_115 : f32 to vector<8x64xf32>
    %402 = arith.subf %401, %400 : vector<8x64xf32>
    %cst_116 = arith.constant 0.000000e+00 : f32
    %403 = vector.broadcast %cst_116 : f32 to vector<8x64xf32>
    %404 = arith.maximumf %402, %403 : vector<8x64xf32>
    %405 = vector.broadcast %388 : vector<8x1xf32> to vector<8x64xf32>
    %406 = arith.mulf %405, %404 : vector<8x64xf32>
    %407 = arith.mulf %406, %396 : vector<8x64xf32>
    %408 = arith.addf %379, %407 : vector<8x64xf32>
    %c0_117 = arith.constant 0 : index
    %c0_118 = arith.constant 0 : index
    %409 = vector.load %arg14[%c0_117, %c0_118] : memref<80x32xbf16, #tpu.memory_space<vmem>>, vector<64x32xbf16>
    %410 = vector.extract_strided_slice %409 {offsets = [0, 16], sizes = [64, 8], strides = [1, 1]} : vector<64x32xbf16> to vector<64x8xbf16>
    %411 = arith.truncf %408 : vector<8x64xf32> to vector<8x64xbf16>
    %cst_119 = arith.constant dense<0.000000e+00> : vector<8x8xf32>
    %412 = tpu.matmul %411, %410, %cst_119 {dimension_numbers = #tpu.dot_dimension_numbers<[1], [0], [0], [1], [0, 0, 1, 1], [], []>} : vector<8x64xbf16>, vector<64x8xbf16>, vector<8x8xf32> -> vector<8x8xf32>
    %413 = arith.addf %349, %412 : vector<8x8xf32>
    %cst_120 = arith.constant 0.000000e+00 : f32
    %414 = vector.broadcast %cst_120 : f32 to vector<8x16xf32>
    %415 = vector.extract_strided_slice %11 {offsets = [0, 20], sizes = [8, 1], strides = [1, 1]} : vector<8x32xf32> to vector<8x1xf32>
    %cst_121 = arith.constant 5.000000e-01 : f32
    %416 = vector.broadcast %cst_121 : f32 to vector<8x1xf32>
    %417 = arith.mulf %415, %416 : vector<8x1xf32>
    %418 = arith.addf %40, %417 : vector<8x1xf32>
    %419 = vector.extract_strided_slice %11 {offsets = [0, 21], sizes = [8, 1], strides = [1, 1]} : vector<8x32xf32> to vector<8x1xf32>
    %cst_122 = arith.constant 5.000000e-01 : f32
    %420 = vector.broadcast %cst_122 : f32 to vector<8x1xf32>
    %421 = arith.mulf %419, %420 : vector<8x1xf32>
    %422 = arith.addf %44, %421 : vector<8x1xf32>
    %423 = vector.extract_strided_slice %348 {offsets = [0, 2], sizes = [8, 1], strides = [1, 1]} : vector<8x4xf32> to vector<8x1xf32>
    %424 = vector.broadcast %418 : vector<8x1xf32> to vector<8x16xf32>
    %425 = vector.broadcast %54 : vector<1x16xf32> to vector<8x16xf32>
    %426 = arith.subf %424, %425 : vector<8x16xf32>
    %427 = math.absf %426 : vector<8x16xf32>
    %cst_123 = arith.constant 1.000000e+00 : f32
    %428 = vector.broadcast %cst_123 : f32 to vector<8x16xf32>
    %429 = arith.subf %428, %427 : vector<8x16xf32>
    %cst_124 = arith.constant 0.000000e+00 : f32
    %430 = vector.broadcast %cst_124 : f32 to vector<8x16xf32>
    %431 = arith.maximumf %429, %430 : vector<8x16xf32>
    %432 = vector.broadcast %422 : vector<8x1xf32> to vector<8x16xf32>
    %433 = vector.broadcast %51 : vector<1x16xf32> to vector<8x16xf32>
    %434 = arith.subf %432, %433 : vector<8x16xf32>
    %435 = math.absf %434 : vector<8x16xf32>
    %cst_125 = arith.constant 1.000000e+00 : f32
    %436 = vector.broadcast %cst_125 : f32 to vector<8x16xf32>
    %437 = arith.subf %436, %435 : vector<8x16xf32>
    %cst_126 = arith.constant 0.000000e+00 : f32
    %438 = vector.broadcast %cst_126 : f32 to vector<8x16xf32>
    %439 = arith.maximumf %437, %438 : vector<8x16xf32>
    %440 = vector.broadcast %423 : vector<8x1xf32> to vector<8x16xf32>
    %441 = arith.mulf %440, %439 : vector<8x16xf32>
    %442 = arith.mulf %441, %431 : vector<8x16xf32>
    %443 = arith.addf %414, %442 : vector<8x16xf32>
    %444 = vector.extract_strided_slice %11 {offsets = [0, 22], sizes = [8, 1], strides = [1, 1]} : vector<8x32xf32> to vector<8x1xf32>
    %cst_127 = arith.constant 5.000000e-01 : f32
    %445 = vector.broadcast %cst_127 : f32 to vector<8x1xf32>
    %446 = arith.mulf %444, %445 : vector<8x1xf32>
    %447 = arith.addf %40, %446 : vector<8x1xf32>
    %448 = vector.extract_strided_slice %11 {offsets = [0, 23], sizes = [8, 1], strides = [1, 1]} : vector<8x32xf32> to vector<8x1xf32>
    %cst_128 = arith.constant 5.000000e-01 : f32
    %449 = vector.broadcast %cst_128 : f32 to vector<8x1xf32>
    %450 = arith.mulf %448, %449 : vector<8x1xf32>
    %451 = arith.addf %44, %450 : vector<8x1xf32>
    %452 = vector.extract_strided_slice %348 {offsets = [0, 3], sizes = [8, 1], strides = [1, 1]} : vector<8x4xf32> to vector<8x1xf32>
    %453 = vector.broadcast %447 : vector<8x1xf32> to vector<8x16xf32>
    %454 = vector.broadcast %54 : vector<1x16xf32> to vector<8x16xf32>
    %455 = arith.subf %453, %454 : vector<8x16xf32>
    %456 = math.absf %455 : vector<8x16xf32>
    %cst_129 = arith.constant 1.000000e+00 : f32
    %457 = vector.broadcast %cst_129 : f32 to vector<8x16xf32>
    %458 = arith.subf %457, %456 : vector<8x16xf32>
    %cst_130 = arith.constant 0.000000e+00 : f32
    %459 = vector.broadcast %cst_130 : f32 to vector<8x16xf32>
    %460 = arith.maximumf %458, %459 : vector<8x16xf32>
    %461 = vector.broadcast %451 : vector<8x1xf32> to vector<8x16xf32>
    %462 = vector.broadcast %51 : vector<1x16xf32> to vector<8x16xf32>
    %463 = arith.subf %461, %462 : vector<8x16xf32>
    %464 = math.absf %463 : vector<8x16xf32>
    %cst_131 = arith.constant 1.000000e+00 : f32
    %465 = vector.broadcast %cst_131 : f32 to vector<8x16xf32>
    %466 = arith.subf %465, %464 : vector<8x16xf32>
    %cst_132 = arith.constant 0.000000e+00 : f32
    %467 = vector.broadcast %cst_132 : f32 to vector<8x16xf32>
    %468 = arith.maximumf %466, %467 : vector<8x16xf32>
    %469 = vector.broadcast %452 : vector<8x1xf32> to vector<8x16xf32>
    %470 = arith.mulf %469, %468 : vector<8x16xf32>
    %471 = arith.mulf %470, %460 : vector<8x16xf32>
    %472 = arith.addf %443, %471 : vector<8x16xf32>
    %c64_133 = arith.constant 64 : index
    %c0_134 = arith.constant 0 : index
    %473 = vector.load %arg14[%c64_133, %c0_134] : memref<80x32xbf16, #tpu.memory_space<vmem>>, vector<16x32xbf16>
    %474 = vector.extract_strided_slice %473 {offsets = [0, 16], sizes = [16, 8], strides = [1, 1]} : vector<16x32xbf16> to vector<16x8xbf16>
    %475 = arith.truncf %472 : vector<8x16xf32> to vector<8x16xbf16>
    %cst_135 = arith.constant dense<0.000000e+00> : vector<8x8xf32>
    %476 = tpu.matmul %475, %474, %cst_135 {dimension_numbers = #tpu.dot_dimension_numbers<[1], [0], [0], [1], [0, 0, 1, 1], [], []>} : vector<8x16xbf16>, vector<16x8xbf16>, vector<8x8xf32> -> vector<8x8xf32>
    %477 = arith.addf %413, %476 : vector<8x8xf32>
    %478 = vector.extract_strided_slice %16 {offsets = [0, 12], sizes = [8, 4], strides = [1, 1]} : vector<8x16xf32> to vector<8x4xf32>
    %cst_136 = arith.constant dense<0xFF800000> : vector<8xf32>
    %479 = vector.multi_reduction <maximumf>, %478, %cst_136 [1] : vector<8x4xf32> to vector<8xf32>
    %480 = vector.shape_cast %479 : vector<8xf32> to vector<8x1xf32>
    %481 = vector.broadcast %480 : vector<8x1xf32> to vector<8x4xf32>
    %482 = arith.subf %478, %481 : vector<8x4xf32>
    %483 = math.exp %482 : vector<8x4xf32>
    %cst_137 = arith.constant dense<0.000000e+00> : vector<8xf32>
    %484 = vector.multi_reduction <add>, %483, %cst_137 [1] : vector<8x4xf32> to vector<8xf32>
    %485 = vector.shape_cast %484 : vector<8xf32> to vector<8x1xf32>
    %cst_138 = arith.constant 1.000000e+00 : f32
    %486 = vector.broadcast %cst_138 : f32 to vector<8x1xf32>
    %487 = arith.divf %486, %485 : vector<8x1xf32>
    %488 = vector.broadcast %487 : vector<8x1xf32> to vector<8x4xf32>
    %489 = arith.mulf %483, %488 : vector<8x4xf32>
    %cst_139 = arith.constant 0.000000e+00 : f32
    %490 = vector.broadcast %cst_139 : f32 to vector<8x8xf32>
    %cst_140 = arith.constant 0.000000e+00 : f32
    %491 = vector.broadcast %cst_140 : f32 to vector<8x64xf32>
    %492 = vector.extract_strided_slice %11 {offsets = [0, 24], sizes = [8, 1], strides = [1, 1]} : vector<8x32xf32> to vector<8x1xf32>
    %cst_141 = arith.constant 1.000000e+00 : f32
    %493 = vector.broadcast %cst_141 : f32 to vector<8x1xf32>
    %494 = arith.mulf %492, %493 : vector<8x1xf32>
    %495 = arith.addf %22, %494 : vector<8x1xf32>
    %496 = vector.extract_strided_slice %11 {offsets = [0, 25], sizes = [8, 1], strides = [1, 1]} : vector<8x32xf32> to vector<8x1xf32>
    %cst_142 = arith.constant 1.000000e+00 : f32
    %497 = vector.broadcast %cst_142 : f32 to vector<8x1xf32>
    %498 = arith.mulf %496, %497 : vector<8x1xf32>
    %499 = arith.addf %26, %498 : vector<8x1xf32>
    %500 = vector.extract_strided_slice %489 {offsets = [0, 0], sizes = [8, 1], strides = [1, 1]} : vector<8x4xf32> to vector<8x1xf32>
    %501 = vector.broadcast %495 : vector<8x1xf32> to vector<8x64xf32>
    %502 = vector.broadcast %36 : vector<1x64xf32> to vector<8x64xf32>
    %503 = arith.subf %501, %502 : vector<8x64xf32>
    %504 = math.absf %503 : vector<8x64xf32>
    %cst_143 = arith.constant 1.000000e+00 : f32
    %505 = vector.broadcast %cst_143 : f32 to vector<8x64xf32>
    %506 = arith.subf %505, %504 : vector<8x64xf32>
    %cst_144 = arith.constant 0.000000e+00 : f32
    %507 = vector.broadcast %cst_144 : f32 to vector<8x64xf32>
    %508 = arith.maximumf %506, %507 : vector<8x64xf32>
    %509 = vector.broadcast %499 : vector<8x1xf32> to vector<8x64xf32>
    %510 = vector.broadcast %33 : vector<1x64xf32> to vector<8x64xf32>
    %511 = arith.subf %509, %510 : vector<8x64xf32>
    %512 = math.absf %511 : vector<8x64xf32>
    %cst_145 = arith.constant 1.000000e+00 : f32
    %513 = vector.broadcast %cst_145 : f32 to vector<8x64xf32>
    %514 = arith.subf %513, %512 : vector<8x64xf32>
    %cst_146 = arith.constant 0.000000e+00 : f32
    %515 = vector.broadcast %cst_146 : f32 to vector<8x64xf32>
    %516 = arith.maximumf %514, %515 : vector<8x64xf32>
    %517 = vector.broadcast %500 : vector<8x1xf32> to vector<8x64xf32>
    %518 = arith.mulf %517, %516 : vector<8x64xf32>
    %519 = arith.mulf %518, %508 : vector<8x64xf32>
    %520 = arith.addf %491, %519 : vector<8x64xf32>
    %521 = vector.extract_strided_slice %11 {offsets = [0, 26], sizes = [8, 1], strides = [1, 1]} : vector<8x32xf32> to vector<8x1xf32>
    %cst_147 = arith.constant 1.000000e+00 : f32
    %522 = vector.broadcast %cst_147 : f32 to vector<8x1xf32>
    %523 = arith.mulf %521, %522 : vector<8x1xf32>
    %524 = arith.addf %22, %523 : vector<8x1xf32>
    %525 = vector.extract_strided_slice %11 {offsets = [0, 27], sizes = [8, 1], strides = [1, 1]} : vector<8x32xf32> to vector<8x1xf32>
    %cst_148 = arith.constant 1.000000e+00 : f32
    %526 = vector.broadcast %cst_148 : f32 to vector<8x1xf32>
    %527 = arith.mulf %525, %526 : vector<8x1xf32>
    %528 = arith.addf %26, %527 : vector<8x1xf32>
    %529 = vector.extract_strided_slice %489 {offsets = [0, 1], sizes = [8, 1], strides = [1, 1]} : vector<8x4xf32> to vector<8x1xf32>
    %530 = vector.broadcast %524 : vector<8x1xf32> to vector<8x64xf32>
    %531 = vector.broadcast %36 : vector<1x64xf32> to vector<8x64xf32>
    %532 = arith.subf %530, %531 : vector<8x64xf32>
    %533 = math.absf %532 : vector<8x64xf32>
    %cst_149 = arith.constant 1.000000e+00 : f32
    %534 = vector.broadcast %cst_149 : f32 to vector<8x64xf32>
    %535 = arith.subf %534, %533 : vector<8x64xf32>
    %cst_150 = arith.constant 0.000000e+00 : f32
    %536 = vector.broadcast %cst_150 : f32 to vector<8x64xf32>
    %537 = arith.maximumf %535, %536 : vector<8x64xf32>
    %538 = vector.broadcast %528 : vector<8x1xf32> to vector<8x64xf32>
    %539 = vector.broadcast %33 : vector<1x64xf32> to vector<8x64xf32>
    %540 = arith.subf %538, %539 : vector<8x64xf32>
    %541 = math.absf %540 : vector<8x64xf32>
    %cst_151 = arith.constant 1.000000e+00 : f32
    %542 = vector.broadcast %cst_151 : f32 to vector<8x64xf32>
    %543 = arith.subf %542, %541 : vector<8x64xf32>
    %cst_152 = arith.constant 0.000000e+00 : f32
    %544 = vector.broadcast %cst_152 : f32 to vector<8x64xf32>
    %545 = arith.maximumf %543, %544 : vector<8x64xf32>
    %546 = vector.broadcast %529 : vector<8x1xf32> to vector<8x64xf32>
    %547 = arith.mulf %546, %545 : vector<8x64xf32>
    %548 = arith.mulf %547, %537 : vector<8x64xf32>
    %549 = arith.addf %520, %548 : vector<8x64xf32>
    %c0_153 = arith.constant 0 : index
    %c0_154 = arith.constant 0 : index
    %550 = vector.load %arg14[%c0_153, %c0_154] : memref<80x32xbf16, #tpu.memory_space<vmem>>, vector<64x32xbf16>
    %551 = vector.extract_strided_slice %550 {offsets = [0, 24], sizes = [64, 8], strides = [1, 1]} : vector<64x32xbf16> to vector<64x8xbf16>
    %552 = arith.truncf %549 : vector<8x64xf32> to vector<8x64xbf16>
    %cst_155 = arith.constant dense<0.000000e+00> : vector<8x8xf32>
    %553 = tpu.matmul %552, %551, %cst_155 {dimension_numbers = #tpu.dot_dimension_numbers<[1], [0], [0], [1], [0, 0, 1, 1], [], []>} : vector<8x64xbf16>, vector<64x8xbf16>, vector<8x8xf32> -> vector<8x8xf32>
    %554 = arith.addf %490, %553 : vector<8x8xf32>
    %cst_156 = arith.constant 0.000000e+00 : f32
    %555 = vector.broadcast %cst_156 : f32 to vector<8x16xf32>
    %556 = vector.extract_strided_slice %11 {offsets = [0, 28], sizes = [8, 1], strides = [1, 1]} : vector<8x32xf32> to vector<8x1xf32>
    %cst_157 = arith.constant 5.000000e-01 : f32
    %557 = vector.broadcast %cst_157 : f32 to vector<8x1xf32>
    %558 = arith.mulf %556, %557 : vector<8x1xf32>
    %559 = arith.addf %40, %558 : vector<8x1xf32>
    %560 = vector.extract_strided_slice %11 {offsets = [0, 29], sizes = [8, 1], strides = [1, 1]} : vector<8x32xf32> to vector<8x1xf32>
    %cst_158 = arith.constant 5.000000e-01 : f32
    %561 = vector.broadcast %cst_158 : f32 to vector<8x1xf32>
    %562 = arith.mulf %560, %561 : vector<8x1xf32>
    %563 = arith.addf %44, %562 : vector<8x1xf32>
    %564 = vector.extract_strided_slice %489 {offsets = [0, 2], sizes = [8, 1], strides = [1, 1]} : vector<8x4xf32> to vector<8x1xf32>
    %565 = vector.broadcast %559 : vector<8x1xf32> to vector<8x16xf32>
    %566 = vector.broadcast %54 : vector<1x16xf32> to vector<8x16xf32>
    %567 = arith.subf %565, %566 : vector<8x16xf32>
    %568 = math.absf %567 : vector<8x16xf32>
    %cst_159 = arith.constant 1.000000e+00 : f32
    %569 = vector.broadcast %cst_159 : f32 to vector<8x16xf32>
    %570 = arith.subf %569, %568 : vector<8x16xf32>
    %cst_160 = arith.constant 0.000000e+00 : f32
    %571 = vector.broadcast %cst_160 : f32 to vector<8x16xf32>
    %572 = arith.maximumf %570, %571 : vector<8x16xf32>
    %573 = vector.broadcast %563 : vector<8x1xf32> to vector<8x16xf32>
    %574 = vector.broadcast %51 : vector<1x16xf32> to vector<8x16xf32>
    %575 = arith.subf %573, %574 : vector<8x16xf32>
    %576 = math.absf %575 : vector<8x16xf32>
    %cst_161 = arith.constant 1.000000e+00 : f32
    %577 = vector.broadcast %cst_161 : f32 to vector<8x16xf32>
    %578 = arith.subf %577, %576 : vector<8x16xf32>
    %cst_162 = arith.constant 0.000000e+00 : f32
    %579 = vector.broadcast %cst_162 : f32 to vector<8x16xf32>
    %580 = arith.maximumf %578, %579 : vector<8x16xf32>
    %581 = vector.broadcast %564 : vector<8x1xf32> to vector<8x16xf32>
    %582 = arith.mulf %581, %580 : vector<8x16xf32>
    %583 = arith.mulf %582, %572 : vector<8x16xf32>
    %584 = arith.addf %555, %583 : vector<8x16xf32>
    %585 = vector.extract_strided_slice %11 {offsets = [0, 30], sizes = [8, 1], strides = [1, 1]} : vector<8x32xf32> to vector<8x1xf32>
    %cst_163 = arith.constant 5.000000e-01 : f32
    %586 = vector.broadcast %cst_163 : f32 to vector<8x1xf32>
    %587 = arith.mulf %585, %586 : vector<8x1xf32>
    %588 = arith.addf %40, %587 : vector<8x1xf32>
    %589 = vector.extract_strided_slice %11 {offsets = [0, 31], sizes = [8, 1], strides = [1, 1]} : vector<8x32xf32> to vector<8x1xf32>
    %cst_164 = arith.constant 5.000000e-01 : f32
    %590 = vector.broadcast %cst_164 : f32 to vector<8x1xf32>
    %591 = arith.mulf %589, %590 : vector<8x1xf32>
    %592 = arith.addf %44, %591 : vector<8x1xf32>
    %593 = vector.extract_strided_slice %489 {offsets = [0, 3], sizes = [8, 1], strides = [1, 1]} : vector<8x4xf32> to vector<8x1xf32>
    %594 = vector.broadcast %588 : vector<8x1xf32> to vector<8x16xf32>
    %595 = vector.broadcast %54 : vector<1x16xf32> to vector<8x16xf32>
    %596 = arith.subf %594, %595 : vector<8x16xf32>
    %597 = math.absf %596 : vector<8x16xf32>
    %cst_165 = arith.constant 1.000000e+00 : f32
    %598 = vector.broadcast %cst_165 : f32 to vector<8x16xf32>
    %599 = arith.subf %598, %597 : vector<8x16xf32>
    %cst_166 = arith.constant 0.000000e+00 : f32
    %600 = vector.broadcast %cst_166 : f32 to vector<8x16xf32>
    %601 = arith.maximumf %599, %600 : vector<8x16xf32>
    %602 = vector.broadcast %592 : vector<8x1xf32> to vector<8x16xf32>
    %603 = vector.broadcast %51 : vector<1x16xf32> to vector<8x16xf32>
    %604 = arith.subf %602, %603 : vector<8x16xf32>
    %605 = math.absf %604 : vector<8x16xf32>
    %cst_167 = arith.constant 1.000000e+00 : f32
    %606 = vector.broadcast %cst_167 : f32 to vector<8x16xf32>
    %607 = arith.subf %606, %605 : vector<8x16xf32>
    %cst_168 = arith.constant 0.000000e+00 : f32
    %608 = vector.broadcast %cst_168 : f32 to vector<8x16xf32>
    %609 = arith.maximumf %607, %608 : vector<8x16xf32>
    %610 = vector.broadcast %593 : vector<8x1xf32> to vector<8x16xf32>
    %611 = arith.mulf %610, %609 : vector<8x16xf32>
    %612 = arith.mulf %611, %601 : vector<8x16xf32>
    %613 = arith.addf %584, %612 : vector<8x16xf32>
    %c64_169 = arith.constant 64 : index
    %c0_170 = arith.constant 0 : index
    %614 = vector.load %arg14[%c64_169, %c0_170] : memref<80x32xbf16, #tpu.memory_space<vmem>>, vector<16x32xbf16>
    %615 = vector.extract_strided_slice %614 {offsets = [0, 24], sizes = [16, 8], strides = [1, 1]} : vector<16x32xbf16> to vector<16x8xbf16>
    %616 = arith.truncf %613 : vector<8x16xf32> to vector<8x16xbf16>
    %cst_171 = arith.constant dense<0.000000e+00> : vector<8x8xf32>
    %617 = tpu.matmul %616, %615, %cst_171 {dimension_numbers = #tpu.dot_dimension_numbers<[1], [0], [0], [1], [0, 0, 1, 1], [], []>} : vector<8x16xbf16>, vector<16x8xbf16>, vector<8x8xf32> -> vector<8x8xf32>
    %618 = arith.addf %554, %617 : vector<8x8xf32>
    %619 = tpu.concatenate %195, %336, %477, %618 in 1 : vector<8x8xf32>, vector<8x8xf32>, vector<8x8xf32>, vector<8x8xf32> -> vector<8x32xf32>
    %620 = arith.truncf %619 : vector<8x32xf32> to vector<8x32xbf16>
    %c0_172 = arith.constant 0 : index
    %c0_173 = arith.constant 0 : index
    %621 = vector.load %arg11[%c0_172, %c0_173] : memref<32x32xbf16, #tpu.memory_space<vmem>>, vector<32x32xbf16>
    %cst_174 = arith.constant dense<0.000000e+00> : vector<8x32xf32>
    %622 = tpu.matmul %620, %621, %cst_174 {dimension_numbers = #tpu.dot_dimension_numbers<[1], [0], [0], [1], [0, 0, 1, 1], [], []>} : vector<8x32xbf16>, vector<32x32xbf16>, vector<8x32xf32> -> vector<8x32xf32>
    %c0_175 = arith.constant 0 : index
    %c0_176 = arith.constant 0 : index
    %623 = vector.load %arg12[%c0_175, %c0_176] : memref<1x32xf32, #tpu.memory_space<vmem>>, vector<1x32xf32>
    %624 = vector.broadcast %623 : vector<1x32xf32> to vector<8x32xf32>
    %625 = arith.addf %622, %624 : vector<8x32xf32>
    %c0_177 = arith.constant 0 : index
    %c0_178 = arith.constant 0 : index
    %c0_179 = arith.constant 0 : index
    %626 = vector.load %arg13[%c0_177, %c0_178, %c0_179] : memref<1x8x32xf32, #tpu.memory_space<vmem>>, vector<1x8x32xf32>
    %627 = vector.shape_cast %626 : vector<1x8x32xf32> to vector<8x32xf32>
    %628 = vector.shape_cast %625 : vector<8x32xf32> to vector<1x8x32xf32>
    tpu.vector_store %arg13[%c0_177, %c0_178, %c0_179], %628 {strides = array<i32>} : memref<1x8x32xf32, #tpu.memory_space<vmem>>, vector<1x8x32xf32>,
    return
  }
  func.func @transform_0(%arg0: i32, %arg1: i32) -> (i32, i32, i32) {
    %c0_i32 = arith.constant 0 : i32
    %c0_i32_0 = arith.constant 0 : i32
    return %arg0, %arg1, %c0_i32 : i32, i32, i32
  }
  func.func @transform_1(%arg0: i32, %arg1: i32) -> (i32, i32, i32) {
    %c0_i32 = arith.constant 0 : i32
    %c0_i32_0 = arith.constant 0 : i32
    return %arg0, %arg1, %c0_i32 : i32, i32, i32
  }
  func.func @transform_2(%arg0: i32, %arg1: i32) -> (i32, i32, i32) {
    %c0_i32 = arith.constant 0 : i32
    %c0_i32_0 = arith.constant 0 : i32
    %c0_i32_1 = arith.constant 0 : i32
    return %arg0, %c0_i32, %c0_i32_0 : i32, i32, i32
  }
  func.func @transform_3(%arg0: i32, %arg1: i32) -> (i32, i32) {
    %c0_i32 = arith.constant 0 : i32
    %c0_i32_0 = arith.constant 0 : i32
    %c0_i32_1 = arith.constant 0 : i32
    return %c0_i32, %c0_i32_0 : i32, i32
  }
  func.func @transform_4(%arg0: i32, %arg1: i32) -> (i32, i32) {
    %c0_i32 = arith.constant 0 : i32
    %c0_i32_0 = arith.constant 0 : i32
    %c0_i32_1 = arith.constant 0 : i32
    return %c0_i32, %c0_i32_0 : i32, i32
  }
  func.func @transform_5(%arg0: i32, %arg1: i32) -> (i32, i32) {
    %c0_i32 = arith.constant 0 : i32
    %c0_i32_0 = arith.constant 0 : i32
    %c0_i32_1 = arith.constant 0 : i32
    return %c0_i32, %c0_i32_0 : i32, i32
  }
  func.func @transform_6(%arg0: i32, %arg1: i32) -> (i32, i32) {
    %c0_i32 = arith.constant 0 : i32
    %c0_i32_0 = arith.constant 0 : i32
    %c0_i32_1 = arith.constant 0 : i32
    return %c0_i32, %c0_i32_0 : i32, i32
  }
  func.func @transform_7(%arg0: i32, %arg1: i32) -> (i32, i32) {
    %c0_i32 = arith.constant 0 : i32
    %c0_i32_0 = arith.constant 0 : i32
    %c0_i32_1 = arith.constant 0 : i32
    return %c0_i32, %c0_i32_0 : i32, i32
  }
  func.func @transform_8(%arg0: i32, %arg1: i32) -> (i32, i32) {
    %c0_i32 = arith.constant 0 : i32
    %c0_i32_0 = arith.constant 0 : i32
    %c0_i32_1 = arith.constant 0 : i32
    return %c0_i32, %c0_i32_0 : i32, i32
  }
  func.func @transform_9(%arg0: i32, %arg1: i32) -> (i32, i32) {
    %c0_i32 = arith.constant 0 : i32
    %c0_i32_0 = arith.constant 0 : i32
    %c0_i32_1 = arith.constant 0 : i32
    return %c0_i32, %c0_i32_0 : i32, i32
  }
  func.func @transform_10(%arg0: i32, %arg1: i32) -> (i32, i32) {
    %c0_i32 = arith.constant 0 : i32
    %c0_i32_0 = arith.constant 0 : i32
    %c0_i32_1 = arith.constant 0 : i32
    return %c0_i32, %c0_i32_0 : i32, i32
  }
  func.func @transform_11(%arg0: i32, %arg1: i32) -> (i32, i32, i32) {
    %c0_i32 = arith.constant 0 : i32
    %c0_i32_0 = arith.constant 0 : i32
    return %arg0, %arg1, %c0_i32 : i32, i32, i32
  }
}

</mosaic_0001>

<llo_original>
// kernel: tpu_custom_call.1
$region0: #{tpu_custom_call.1}
  #allocation0 [shape = 'u32[]', space=smem, size = 0x4, offset = 0x4, fixed_abs, tag = 'smem constant byte address 0x4 - core index']
  #allocation1 [shape = 'u32[144,128]{1,0:T(1,128)}', space=vmem, size = 0x12000, scoped, tag = 'internal scratch']
  #allocation2 [shape = 'bf16[80,32]{1,0:T(8,128)(2,1)}', space=vmem, size = 0x5000, scoped, tag = 'scratch operand']
  %s0 = inlined_call_operand.vmem [shape: f32[2,8,32], index: 0, kind: input, shape index: {}]
  %s1 = inlined_call_operand.vmem [shape: f32[2,8,4], index: 1, kind: input, shape index: {}]
  %s2 = inlined_call_operand.vmem [shape: f32[2,80,32], index: 2, kind: input, shape index: {}]
  %s3 = inlined_call_operand.vmem [shape: bf16[32,32], index: 3, kind: input, shape index: {}]
  %s4 = inlined_call_operand.vmem [shape: f32[1,32], index: 4, kind: input, shape index: {}]
  %s5 = inlined_call_operand.vmem [shape: f32[32,32], index: 5, kind: input, shape index: {}]
  %s6 = inlined_call_operand.vmem [shape: f32[1,32], index: 6, kind: input, shape index: {}]
  %s7 = inlined_call_operand.vmem [shape: f32[32,16], index: 7, kind: input, shape index: {}]
  %s8 = inlined_call_operand.vmem [shape: f32[1,16], index: 8, kind: input, shape index: {}]
  %s9 = inlined_call_operand.vmem [shape: bf16[32,32], index: 9, kind: input, shape index: {}]
  %s10 = inlined_call_operand.vmem [shape: f32[1,32], index: 10, kind: input, shape index: {}]
  %s11 = inlined_call_operand.hbm [shape: f32[2,8,32], index: 11, kind: output, shape index: {}]
  %s12 = sld [smem:[#allocation0]]
  $region81: #{tpu_custom_call.1} parent=0
    _
  %s14 = ssub.s32 1, %s12
  %s15 = scalar_select 0, %s14, %s12
  $region1: #{tpu_custom_call.1} parent=0
    #allocation3 [shape = 'u8[8192]{0}', space=vmem, size = 0x2000, scoped, tag = 'output window, operand 0']
    #allocation4 [shape = 's32[2]{0}', space=sflag, size = 0x8, scoped, tag = 'scoped memory for tpu_custom_call.1']
    %16 = vsyncpa [#allocation4], 0
    %s17 = scalar_lea.sflag [#allocation4], 1
    %18 = vsyncpa %s17, 0
    loop: start=0, step=1, limit=4
    $region2: #{tpu_custom_call.1} parent=1 // loop_pre_header
      _
    $region3: #{tpu_custom_call.1} parent=1 // loop_header
      %s20 = sphi 0, %s24
      %p21 = scmp.ge.s32.totalorder %s20, 4
      %s27 = sphi 0, %s39
      %s28 = sphi 0, %s35
      %s29 = sphi 0, %s27
      %s30 = sphi 0, %s28
      %s31 = sphi 0, %s29
      %s32 = sphi 0, %s30
      %s44 = sphi 0, %s46
      %s47 = sphi 0, %s44
      %s48 = sphi 0, %s47
      %s64 = sphi 0, %s48
      %s72 = sphi 0, %s74
      %s75 = sphi 0, %s72
      %s76 = sphi 0, %s75
      %s92 = sphi 0, %s76
      %s98 = sphi 0, %s100
      %s101 = sphi 0, %s98
      %s102 = sphi 0, %s101
      %s118 = sphi 0, %s102
      %s122 = sphi 0, %s122
      %s124 = sphi 0, %s122
      %s125 = sphi 0, %s124
      %s139 = sphi 0, %s125
      %s143 = sphi 0, %s143
      %s145 = sphi 0, %s143
      %s146 = sphi 0, %s145
      %s160 = sphi 0, %s146
      %s164 = sphi 0, %s164
      %s166 = sphi 0, %s164
      %s167 = sphi 0, %s166
      %s181 = sphi 0, %s167
      %s185 = sphi 0, %s185
      %s187 = sphi 0, %s185
      %s188 = sphi 0, %s187
      %s202 = sphi 0, %s188
      %s206 = sphi 0, %s206
      %s208 = sphi 0, %s206
      %s209 = sphi 0, %s208
      %s223 = sphi 0, %s209
      %s227 = sphi 0, %s227
      %s229 = sphi 0, %s227
      %s230 = sphi 0, %s229
      %s244 = sphi 0, %s230
      %s248 = sphi 0, %s248
      %s250 = sphi 0, %s248
      %s251 = sphi 0, %s250
      %s265 = sphi 0, %s251
      %s269 = sphi 0, %s269
      %s271 = sphi 0, %s269
      %s272 = sphi 0, %s271
      %s286 = sphi 0, %s272
      %s294 = sphi 0, %s296
      %s297 = sphi 0, %s294
      %s298 = sphi 0, %s297
      %s314 = sphi 0, %s298
    $region4: #{tpu_custom_call.1} parent=1 // loop_header_branch
      %23 = sbr.rel (%p21) target = $region8
    $region5: #{tpu_custom_call.1} parent=1 // loop_body
      %s25 = ssub.s32 %s20, 1
      %s26 = ssub.s32 %s20, 2
      %s33 = sadd.s32 1, %s28
      %p34 = scmp.ge.s32.totalorder %s33, 1
      %s35 = scalar_select %p34, 0, %s33
      %s36 = sadd.s32 1, %s27
      %s37 = scalar_select %p34, %s36, %s27
      %p38 = scmp.ge.s32.totalorder %s37, 2
      %s39 = scalar_select %p38, 0, %s37
      %s40 = ssub.s32 %s27, %s39
      %s41 = ssub.s32 %s28, %s35
      %s42 = sor.u32 %s40, %s41
      %p43 = scmp.eq.s32.totalorder %s42, 0
      %s45 = sadd.s32 %s44, 1
      %s46 = scalar_select %p43, %s44, %s45
      %p49 = pneg %p43
      %p50 = scmp.eq.s32.totalorder %s20, 1
      %p51 = por %p49, %p50
      %p52 = scmp.ne.s32.totalorder %s44, %s47
      %p53 = scmp.eq.s32.totalorder %s20, 0
      %p54 = por %p52, %p53
      %p55 = scmp.ne.s32.totalorder %s44, %s47
      %p56 = scmp.eq.s32.totalorder %s25, 1
      %p57 = por %p55, %p56
      %p58 = scmp.ne.s32.totalorder %s47, %s48
      %p59 = scmp.eq.s32.totalorder %s25, 0
      %p60 = por %p58, %p59
      %p61 = scmp.ne.s32.totalorder %s47, %s48
      %p62 = scmp.eq.s32.totalorder %s26, 1
      %p63 = por %p61, %p62
      %p65 = scmp.ne.s32.totalorder %s48, %s64
      %p66 = scmp.eq.s32.totalorder %s26, 0
      %p67 = por %p65, %p66
      %s68 = ssub.s32 %s27, %s39
      %s69 = ssub.s32 %s28, %s35
      %s70 = sor.u32 %s68, %s69
      %p71 = scmp.eq.s32.totalorder %s70, 0
      %s73 = sadd.s32 %s72, 1
      %s74 = scalar_select %p71, %s72, %s73
      %p77 = pneg %p71
      %p78 = scmp.eq.s32.totalorder %s20, 1
      %p79 = por %p77, %p78
      %p80 = scmp.ne.s32.totalorder %s72, %s75
      %p81 = scmp.eq.s32.totalorder %s20, 0
      %p82 = por %p80, %p81
      %p83 = scmp.ne.s32.totalorder %s72, %s75
      %p84 = scmp.eq.s32.totalorder %s25, 1
      %p85 = por %p83, %p84
      %p86 = scmp.ne.s32.totalorder %s75, %s76
      %p87 = scmp.eq.s32.totalorder %s25, 0
      %p88 = por %p86, %p87
      %p89 = scmp.ne.s32.totalorder %s75, %s76
      %p90 = scmp.eq.s32.totalorder %s26, 1
      %p91 = por %p89, %p90
      %p93 = scmp.ne.s32.totalorder %s76, %s92
      %p94 = scmp.eq.s32.totalorder %s26, 0
      %p95 = por %p93, %p94
      %s96 = ssub.s32 %s27, %s39
      %p97 = scmp.eq.s32.totalorder %s96, 0
      %s99 = sadd.s32 %s98, 1
      %s100 = scalar_select %p97, %s98, %s99
      %p103 = pneg %p97
      %p104 = scmp.eq.s32.totalorder %s20, 1
      %p105 = por %p103, %p104
      %p106 = scmp.ne.s32.totalorder %s98, %s101
      %p107 = scmp.eq.s32.totalorder %s20, 0
      %p108 = por %p106, %p107
      %p109 = scmp.ne.s32.totalorder %s98, %s101
      %p110 = scmp.eq.s32.totalorder %s25, 1
      %p111 = por %p109, %p110
      %p112 = scmp.ne.s32.totalorder %s101, %s102
      %p113 = scmp.eq.s32.totalorder %s25, 0
      %p114 = por %p112, %p113
      %p115 = scmp.ne.s32.totalorder %s101, %s102
      %p116 = scmp.eq.s32.totalorder %s26, 1
      %p117 = por %p115, %p116
      %p119 = scmp.ne.s32.totalorder %s102, %s118
      %p120 = scmp.eq.s32.totalorder %s26, 0
      %p121 = por %p119, %p120
      %s123 = sadd.s32 %s122, 1
      %p126 = scmp.eq.s32.totalorder %s20, 1
      %p127 = scmp.ne.s32.totalorder %s122, %s124
      %p128 = scmp.eq.s32.totalorder %s20, 0
      %p129 = por %p127, %p128
      %p130 = scmp.ne.s32.totalorder %s122, %s124
      %p131 = scmp.eq.s32.totalorder %s25, 1
      %p132 = por %p130, %p131
      %p133 = scmp.ne.s32.totalorder %s124, %s125
      %p134 = scmp.eq.s32.totalorder %s25, 0
      %p135 = por %p133, %p134
      %p136 = scmp.ne.s32.totalorder %s124, %s125
      %p137 = scmp.eq.s32.totalorder %s26, 1
      %p138 = por %p136, %p137
      %p140 = scmp.ne.s32.totalorder %s125, %s139
      %p141 = scmp.eq.s32.totalorder %s26, 0
      %p142 = por %p140, %p141
      %s144 = sadd.s32 %s143, 1
      %p147 = scmp.eq.s32.totalorder %s20, 1
      %p148 = scmp.ne.s32.totalorder %s143, %s145
      %p149 = scmp.eq.s32.totalorder %s20, 0
      %p150 = por %p148, %p149
      %p151 = scmp.ne.s32.totalorder %s143, %s145
      %p152 = scmp.eq.s32.totalorder %s25, 1
      %p153 = por %p151, %p152
      %p154 = scmp.ne.s32.totalorder %s145, %s146
      %p155 = scmp.eq.s32.totalorder %s25, 0
      %p156 = por %p154, %p155
      %p157 = scmp.ne.s32.totalorder %s145, %s146
      %p158 = scmp.eq.s32.totalorder %s26, 1
      %p159 = por %p157, %p158
      %p161 = scmp.ne.s32.totalorder %s146, %s160
      %p162 = scmp.eq.s32.totalorder %s26, 0
      %p163 = por %p161, %p162
      %s165 = sadd.s32 %s164, 1
      %p168 = scmp.eq.s32.totalorder %s20, 1
      %p169 = scmp.ne.s32.totalorder %s164, %s166
      %p170 = scmp.eq.s32.totalorder %s20, 0
      %p171 = por %p169, %p170
      %p172 = scmp.ne.s32.totalorder %s164, %s166
      %p173 = scmp.eq.s32.totalorder %s25, 1
      %p174 = por %p172, %p173
      %p175 = scmp.ne.s32.totalorder %s166, %s167
      %p176 = scmp.eq.s32.totalorder %s25, 0
      %p177 = por %p175, %p176
      %p178 = scmp.ne.s32.totalorder %s166, %s167
      %p179 = scmp.eq.s32.totalorder %s26, 1
      %p180 = por %p178, %p179
      %p182 = scmp.ne.s32.totalorder %s167, %s181
      %p183 = scmp.eq.s32.totalorder %s26, 0
      %p184 = por %p182, %p183
      %s186 = sadd.s32 %s185, 1
      %p189 = scmp.eq.s32.totalorder %s20, 1
      %p190 = scmp.ne.s32.totalorder %s185, %s187
      %p191 = scmp.eq.s32.totalorder %s20, 0
      %p192 = por %p190, %p191
      %p193 = scmp.ne.s32.totalorder %s185, %s187
      %p194 = scmp.eq.s32.totalorder %s25, 1
      %p195 = por %p193, %p194
      %p196 = scmp.ne.s32.totalorder %s187, %s188
      %p197 = scmp.eq.s32.totalorder %s25, 0
      %p198 = por %p196, %p197
      %p199 = scmp.ne.s32.totalorder %s187, %s188
      %p200 = scmp.eq.s32.totalorder %s26, 1
      %p201 = por %p199, %p200
      %p203 = scmp.ne.s32.totalorder %s188, %s202
      %p204 = scmp.eq.s32.totalorder %s26, 0
      %p205 = por %p203, %p204
      %s207 = sadd.s32 %s206, 1
      %p210 = scmp.eq.s32.totalorder %s20, 1
      %p211 = scmp.ne.s32.totalorder %s206, %s208
      %p212 = scmp.eq.s32.totalorder %s20, 0
      %p213 = por %p211, %p212
      %p214 = scmp.ne.s32.totalorder %s206, %s208
      %p215 = scmp.eq.s32.totalorder %s25, 1
      %p216 = por %p214, %p215
      %p217 = scmp.ne.s32.totalorder %s208, %s209
      %p218 = scmp.eq.s32.totalorder %s25, 0
      %p219 = por %p217, %p218
      %p220 = scmp.ne.s32.totalorder %s208, %s209
      %p221 = scmp.eq.s32.totalorder %s26, 1
      %p222 = por %p220, %p221
      %p224 = scmp.ne.s32.totalorder %s209, %s223
      %p225 = scmp.eq.s32.totalorder %s26, 0
      %p226 = por %p224, %p225
      %s228 = sadd.s32 %s227, 1
      %p231 = scmp.eq.s32.totalorder %s20, 1
      %p232 = scmp.ne.s32.totalorder %s227, %s229
      %p233 = scmp.eq.s32.totalorder %s20, 0
      %p234 = por %p232, %p233
      %p235 = scmp.ne.s32.totalorder %s227, %s229
      %p236 = scmp.eq.s32.totalorder %s25, 1
      %p237 = por %p235, %p236
      %p238 = scmp.ne.s32.totalorder %s229, %s230
      %p239 = scmp.eq.s32.totalorder %s25, 0
      %p240 = por %p238, %p239
      %p241 = scmp.ne.s32.totalorder %s229, %s230
      %p242 = scmp.eq.s32.totalorder %s26, 1
      %p243 = por %p241, %p242
      %p245 = scmp.ne.s32.totalorder %s230, %s244
      %p246 = scmp.eq.s32.totalorder %s26, 0
      %p247 = por %p245, %p246
      %s249 = sadd.s32 %s248, 1
      %p252 = scmp.eq.s32.totalorder %s20, 1
      %p253 = scmp.ne.s32.totalorder %s248, %s250
      %p254 = scmp.eq.s32.totalorder %s20, 0
      %p255 = por %p253, %p254
      %p256 = scmp.ne.s32.totalorder %s248, %s250
      %p257 = scmp.eq.s32.totalorder %s25, 1
      %p258 = por %p256, %p257
      %p259 = scmp.ne.s32.totalorder %s250, %s251
      %p260 = scmp.eq.s32.totalorder %s25, 0
      %p261 = por %p259, %p260
      %p262 = scmp.ne.s32.totalorder %s250, %s251
      %p263 = scmp.eq.s32.totalorder %s26, 1
      %p264 = por %p262, %p263
      %p266 = scmp.ne.s32.totalorder %s251, %s265
      %p267 = scmp.eq.s32.totalorder %s26, 0
      %p268 = por %p266, %p267
      %s270 = sadd.s32 %s269, 1
      %p273 = scmp.eq.s32.totalorder %s20, 1
      %p274 = scmp.ne.s32.totalorder %s269, %s271
      %p275 = scmp.eq.s32.totalorder %s20, 0
      %p276 = por %p274, %p275
      %p277 = scmp.ne.s32.totalorder %s269, %s271
      %p278 = scmp.eq.s32.totalorder %s25, 1
      %p279 = por %p277, %p278
      %p280 = scmp.ne.s32.totalorder %s271, %s272
      %p281 = scmp.eq.s32.totalorder %s25, 0
      %p282 = por %p280, %p281
      %p283 = scmp.ne.s32.totalorder %s271, %s272
      %p284 = scmp.eq.s32.totalorder %s26, 1
      %p285 = por %p283, %p284
      %p287 = scmp.ne.s32.totalorder %s272, %s286
      %p288 = scmp.eq.s32.totalorder %s26, 0
      %p289 = por %p287, %p288
      %s290 = ssub.s32 %s27, %s39
      %s291 = ssub.s32 %s28, %s35
      %s292 = sor.u32 %s290, %s291
      %p293 = scmp.eq.s32.totalorder %s292, 0
      %s295 = sadd.s32 %s294, 1
      %s296 = scalar_select %p293, %s294, %s295
      %p299 = pneg %p293
      %p300 = scmp.eq.s32.totalorder %s20, 1
      %p301 = por %p299, %p300
      %p302 = scmp.ne.s32.totalorder %s294, %s297
      %p303 = scmp.eq.s32.totalorder %s20, 0
      %p304 = por %p302, %p303
      %p305 = scmp.ne.s32.totalorder %s294, %s297
      %p306 = scmp.eq.s32.totalorder %s25, 1
      %p307 = por %p305, %p306
      %p308 = scmp.ne.s32.totalorder %s297, %s298
      %p309 = scmp.eq.s32.totalorder %s25, 0
      %p310 = por %p308, %p309
      %p311 = scmp.ne.s32.totalorder %s297, %s298
      %p312 = scmp.eq.s32.totalorder %s26, 1
      %p313 = por %p311, %p312
      %p315 = scmp.ne.s32.totalorder %s298, %s314
      %p316 = scmp.eq.s32.totalorder %s26, 0
      %p317 = por %p315, %p316
      %p318 = scmp.le.s32.totalorder 1, %s20
      %p319 = scmp.lt.s32.totalorder %s20, 3
      %p320 = pnand %p318, %p319
      %p321 = pneg %p320
      // Predicated region
      $region9: #{tpu_custom_call.1} parent=5 // pred_check
        _
      $region10: #{tpu_custom_call.1} parent=5 // pred_check_branch
        %323 = sbr.rel (%p320) target = $region12
      $region11: #{tpu_custom_call.1} parent=5 // pred_region
        %s324 = ssub.s32 %s20, 1
        // Predicated region
        $region13: #{tpu_custom_call.1} parent=11 // pred_check
          %p325 = pneg %p135
        $region14: #{tpu_custom_call.1} parent=11 // pred_check_branch
          %327 = sbr.rel (%p325) target = $region16
        $region15: #{tpu_custom_call.1} parent=11 // pred_region
          _
        $region16: #{tpu_custom_call.1} parent=11 // pred_fallthru
          _
        // Predicated region
        $region17: #{tpu_custom_call.1} parent=11 // pred_check
          %p328 = pneg %p156
        $region18: #{tpu_custom_call.1} parent=11 // pred_check_branch
          %330 = sbr.rel (%p328) target = $region20
        $region19: #{tpu_custom_call.1} parent=11 // pred_region
          _
        $region20: #{tpu_custom_call.1} parent=11 // pred_fallthru
          _
        // Predicated region
        $region21: #{tpu_custom_call.1} parent=11 // pred_check
          %p331 = pneg %p177
        $region22: #{tpu_custom_call.1} parent=11 // pred_check_branch
          %333 = sbr.rel (%p331) target = $region24
        $region23: #{tpu_custom_call.1} parent=11 // pred_region
          _
        $region24: #{tpu_custom_call.1} parent=11 // pred_fallthru
          _
        // Predicated region
        $region25: #{tpu_custom_call.1} parent=11 // pred_check
          %p334 = pneg %p198
        $region26: #{tpu_custom_call.1} parent=11 // pred_check_branch
          %336 = sbr.rel (%p334) target = $region28
        $region27: #{tpu_custom_call.1} parent=11 // pred_region
          _
        $region28: #{tpu_custom_call.1} parent=11 // pred_fallthru
          _
        // Predicated region
        $region29: #{tpu_custom_call.1} parent=11 // pred_check
          %p337 = pneg %p219
        $region30: #{tpu_custom_call.1} parent=11 // pred_check_branch
          %339 = sbr.rel (%p337) target = $region32
        $region31: #{tpu_custom_call.1} parent=11 // pred_region
          _
        $region32: #{tpu_custom_call.1} parent=11 // pred_fallthru
          _
        // Predicated region
        $region33: #{tpu_custom_call.1} parent=11 // pred_check
          %p340 = pneg %p240
        $region34: #{tpu_custom_call.1} parent=11 // pred_check_branch
          %342 = sbr.rel (%p340) target = $region36
        $region35: #{tpu_custom_call.1} parent=11 // pred_region
          _
        $region36: #{tpu_custom_call.1} parent=11 // pred_fallthru
          _
        // Predicated region
        $region37: #{tpu_custom_call.1} parent=11 // pred_check
          %p343 = pneg %p261
        $region38: #{tpu_custom_call.1} parent=11 // pred_check_branch
          %345 = sbr.rel (%p343) target = $region40
        $region39: #{tpu_custom_call.1} parent=11 // pred_region
          _
        $region40: #{tpu_custom_call.1} parent=11 // pred_fallthru
          _
        // Predicated region
        $region41: #{tpu_custom_call.1} parent=11 // pred_check
          %p346 = pneg %p282
        $region42: #{tpu_custom_call.1} parent=11 // pred_check_branch
          %348 = sbr.rel (%p346) target = $region44
        $region43: #{tpu_custom_call.1} parent=11 // pred_region
          _
        $region44: #{tpu_custom_call.1} parent=11 // pred_fallthru
          _
      $region12: #{tpu_custom_call.1} parent=5 // pred_fallthru
        _
      %p349 = scmp.lt.s32.totalorder %s20, 2
      // Predicated region
      $region45: #{tpu_custom_call.1} parent=5 // pred_check
        %p350 = pneg %p349
      $region46: #{tpu_custom_call.1} parent=5 // pred_check_branch
        %352 = sbr.rel (%p350) target = $region48
      $region47: #{tpu_custom_call.1} parent=5 // pred_region
        // Predicated region
        $region49: #{tpu_custom_call.1} parent=47 // pred_check
          %p353 = pneg %p54
        $region50: #{tpu_custom_call.1} parent=47 // pred_check_branch
          %355 = sbr.rel (%p353) target = $region52
        $region51: #{tpu_custom_call.1} parent=47 // pred_region
          %p356 = scmp.lt.s32.totalorder %s27, 1
          %s357 = scalar_select %p356, %s27, 1
          %p358 = scmp.lt.s32.totalorder %s28, 0
          %s359 = scalar_select %p358, %s28, 0
          %s360 = sadd.s32 %s359, %s357
          %s361 = smul.addr %s360, 8
          %s362 = scalar_lea.vmem %s0, %s361
        $region52: #{tpu_custom_call.1} parent=47 // pred_fallthru
          _
        // Predicated region
        $region53: #{tpu_custom_call.1} parent=47 // pred_check
          %p363 = pneg %p82
        $region54: #{tpu_custom_call.1} parent=47 // pred_check_branch
          %365 = sbr.rel (%p363) target = $region56
        $region55: #{tpu_custom_call.1} parent=47 // pred_region
          %p366 = scmp.lt.s32.totalorder %s27, 1
          %s367 = scalar_select %p366, %s27, 1
          %p368 = scmp.lt.s32.totalorder %s28, 0
          %s369 = scalar_select %p368, %s28, 0
          %s370 = sadd.s32 %s369, %s367
          %s371 = smul.addr %s370, 8
          %s372 = scalar_lea.vmem %s1, %s371
        $region56: #{tpu_custom_call.1} parent=47 // pred_fallthru
          _
        // Predicated region
        $region57: #{tpu_custom_call.1} parent=47 // pred_check
          %p373 = pneg %p108
        $region58: #{tpu_custom_call.1} parent=47 // pred_check_branch
          %375 = sbr.rel (%p373) target = $region60
        $region59: #{tpu_custom_call.1} parent=47 // pred_region
          %p376 = scmp.lt.s32.totalorder %s27, 1
          %s377 = scalar_select %p376, %s27, 1
          %s378 = smul.addr %s377, 10
          %s379 = smul.addr %s378, 8
          %s380 = scalar_lea.vmem %s2, %s379
        $region60: #{tpu_custom_call.1} parent=47 // pred_fallthru
          _
      $region48: #{tpu_custom_call.1} parent=5 // pred_fallthru
        _
      %p381 = scmp.le.s32.totalorder 1, %s20
      %p382 = scmp.lt.s32.totalorder %s20, 3
      %p383 = pnand %p381, %p382
      %p384 = pneg %p383
      // Predicated region
      $region61: #{tpu_custom_call.1} parent=5 // pred_check
        _
      $region62: #{tpu_custom_call.1} parent=5 // pred_check_branch
        %386 = sbr.rel (%p383) target = $region64
      $region63: #{tpu_custom_call.1} parent=5 // pred_region
        %s387 = ssub.s32 %s20, 1
        %p388 = scmp.lt.s32.totalorder %s29, 1
        %s389 = scalar_select %p388, %s29, 1
        %p390 = scmp.lt.s32.totalorder %s30, 0
        %s391 = scalar_select %p390, %s30, 0
        %s392 = sadd.s32 %s391, %s389
        %s393 = smul.addr %s392, 8
        %s394 = scalar_lea.vmem %s0, %s393
        %p395 = pneg %p60
        %p396 = pneg %p57
        %p397 = scmp.lt.s32.totalorder %s29, 1
        %s398 = scalar_select %p397, %s29, 1
        %p399 = scmp.lt.s32.totalorder %s30, 0
        %s400 = scalar_select %p399, %s30, 0
        %s401 = sadd.s32 %s400, %s398
        %s402 = smul.addr %s401, 8
        %s403 = scalar_lea.vmem %s1, %s402
        %p404 = pneg %p88
        %p405 = pneg %p85
        %p406 = scmp.lt.s32.totalorder %s29, 1
        %s407 = scalar_select %p406, %s29, 1
        %s408 = smul.addr %s407, 10
        %s409 = smul.addr %s408, 8
        %s410 = scalar_lea.vmem %s2, %s409
        %p411 = pneg %p114
        %p412 = pneg %p111
        %p413 = pneg %p135
        %p414 = pneg %p132
        %p415 = pneg %p156
        %p416 = pneg %p153
        %p417 = pneg %p177
        %p418 = pneg %p174
        %p419 = pneg %p198
        %p420 = pneg %p195
        %p421 = pneg %p219
        %p422 = pneg %p216
        %p423 = pneg %p240
        %p424 = pneg %p237
        %p425 = pneg %p261
        %p426 = pneg %p258
        %p427 = pneg %p282
        %p428 = pneg %p279
        %p429 = pneg %p310
        %p430 = pneg %p307
        %s431 = sand.u32 %s297, 1
        %s432 = scalar_lea.sflag [#allocation4], %s431
        %s433 = sand.u32 %s297, 1
        %s434 = smul.addr %s433, 8
        %s435 = scalar_lea.vmem [#allocation3], %s434
        %p436 = scmp.lt.s32.totalorder %s29, 1
        %s437 = scalar_select %p436, %s29, 1
        %p438 = scmp.lt.s32.totalorder %s30, 0
        %s439 = scalar_select %p438, %s30, 0
        %s440 = sadd.s32 %s439, %s437
        %s441 = smul.addr %s440, 8
        %s442 = scalar_lea.vmem %s0, %s441
        %p443 = scmp.lt.s32.totalorder %s29, 1
        %s444 = scalar_select %p443, %s29, 1
        %p445 = scmp.lt.s32.totalorder %s30, 0
        %s446 = scalar_select %p445, %s30, 0
        %s447 = sadd.s32 %s446, %s444
        %s448 = smul.addr %s447, 8
        %s449 = scalar_lea.vmem %s1, %s448
        %p450 = scmp.lt.s32.totalorder %s29, 1
        %s451 = scalar_select %p450, %s29, 1
        %s452 = smul.addr %s451, 10
        %s453 = smul.addr %s452, 8
        %s454 = scalar_lea.vmem %s2, %s453
        %p456 = scmp.eq.s32.totalorder %s30, 0
        // Predicated region
        $region65: #{tpu_custom_call.1} parent=63 // pred_check
          %p457 = pneg %p456
        $region66: #{tpu_custom_call.1} parent=63 // pred_check_branch
          %459 = sbr.rel (%p457) target = $region68
        $region67: #{tpu_custom_call.1} parent=63 // pred_region
          %v460 = vld [vmem:[%s454] sm:$0xff]
          %v461 = vld [vmem:[%s454 + $0x8] sm:$0xff]
          %v462 = vld [vmem:[%s454 + $0x10] sm:$0xff]
          %v463 = vld [vmem:[%s454 + $0x18] sm:$0xff]
          %v464 = vld [vmem:[%s454 + $0x20] sm:$0xff]
          %v465 = vld [vmem:[%s454 + $0x28] sm:$0xff]
          %v466 = vld [vmem:[%s454 + $0x30] sm:$0xff]
          %v467 = vld [vmem:[%s454 + $0x38] sm:$0xff]
          %v468 = vld [vmem:[%s454 + $0x40] sm:$0xff]
          %v469 = vld [vmem:[%s454 + $0x48] sm:$0xff]
          %v470 = vpack.c.bf16 %v461, %v460
          %v471 = vpack.c.bf16 %v463, %v462
          %v472 = vpack.c.bf16 %v465, %v464
          %v473 = vpack.c.bf16 %v467, %v466
          %v474 = vpack.c.bf16 %v469, %v468
          %v475 = vld [vmem:[%s3] sm:$0xf]
          %v476 = vld [vmem:[%s3 + $0x4] sm:$0xf]
          %v477 = vld [vmem:[%s3 + $0x8] sm:$0xf]
          %v478 = vld [vmem:[%s3 + $0xc] sm:$0xf]
          %v479 = vld [vmem:[%s4] sm:$0x1]
          %v481 = vlaneseq
          %v482 = vshrl.u32 %v481, 7
          %v483 = vsub.s32 0, %v482
          %v484 = vrot.slane %v479, %v483
          %v490 = vunpack.c.l.b16 %v475
          %v491 = vunpack.c.l.b16 %v476
          %v492 = vunpack.c.l.b16 %v477
          %v493 = vunpack.c.l.b16 %v478
          %v494 = vpack.c.b16 %v491, %v490
          %v495 = vpack.c.b16 %v493, %v492
          %vm498 = vcmask 261120
          %v500 = vsel %vm498, %v470, 0
          %v503 = vsel %vm498, %v471, 0
          %v506 = vsel %vm498, %v472, 0
          %v509 = vsel %vm498, %v473, 0
          %v512 = vsel %vm498, %v474, 0
          %514 = vmatprep.subr.bf16.mxu0 0
          %515 = vmatpush1.bf16.msra.mxu0 0
          %516 = vmatprep.subr.bf16.mxu0 0
          %517 = vmatpush1.bf16.msra.mxu0 0
          %518 = vmatprep.subr.bf16.mxu0 0
          %519 = vmatpush1.bf16.msra.mxu0 0
          %520 = vmatprep.subr.bf16.mxu0 0
          %521 = vmatpush1.bf16.msra.mxu0 0
          %522 = vmatprep.subr.bf16.mxu0 0
          %523 = vmatpush1.bf16.msra.mxu0 0
          %524 = vmatprep.subr.bf16.mxu0 0
          %525 = vmatpush1.bf16.msra.mxu0 0
          %526 = vmatprep.subr.bf16.mxu0 0
          %527 = vmatpush1.bf16.msra.mxu0 %v495
          %528 = vmatprep.subr.bf16.mxu0 0
          %529 = vmatpush1.bf16.msra.mxu0 %v494
          %530 = vmatprep.subr.bf16.mxu0 0
          %531 = vmatpush2.bf16.msra.mxu0 0
          %532 = vmatprep.subr.bf16.mxu0 0
          %533 = vmatpush2.bf16.msra.mxu0 0
          %534 = vmatprep.subr.bf16.mxu0 0
          %535 = vmatpush2.bf16.msra.mxu0 0
          %536 = vmatprep.subr.bf16.mxu0 0
          %537 = vmatpush2.bf16.msra.mxu0 0
          %538 = vmatprep.subr.bf16.mxu0 0
          %539 = vmatpush2.bf16.msra.mxu0 0
          %540 = vmatprep.subr.bf16.mxu0 0
          %541 = vmatpush2.bf16.msra.mxu0 0
          %542 = vmatprep.subr.bf16.mxu0 0
          %543 = vmatpush2.bf16.msra.mxu0 0
          %544 = vmatprep.subr.bf16.mxu0 0
          %545 = vmatpush2.bf16.msra.mxu0 0
          %546 = vmatprep.mubr.bf16.mxu0 0
          %547 = vmatmul.mubr.bf16.gmra.mxu0 %v500
          %v548 = vpop.f32.mrf.mxu0
          %v549 = vadd.f32 %v484, %v548
          %v550 = vpop.f32.mrf.mxu0
          %v551 = vpop.f32.mrf.mxu0
          %v552 = vadd.f32 %v484, %v551
          %v553 = vpop.f32.mrf.mxu0
          %554 = vmatprep.mubr.bf16.mxu0 0
          %555 = vmatmul.mubr.bf16.gmra.mxu0 %v503
          %v556 = vpop.f32.mrf.mxu0
          %v557 = vadd.f32 %v484, %v556
          %v558 = vpop.f32.mrf.mxu0
          %v559 = vpop.f32.mrf.mxu0
          %v560 = vadd.f32 %v484, %v559
          %v561 = vpop.f32.mrf.mxu0
          %562 = vmatprep.mubr.bf16.mxu0 0
          %563 = vmatmul.mubr.bf16.gmra.mxu0 %v506
          %v564 = vpop.f32.mrf.mxu0
          %v565 = vadd.f32 %v484, %v564
          %v566 = vpop.f32.mrf.mxu0
          %v567 = vpop.f32.mrf.mxu0
          %v568 = vadd.f32 %v484, %v567
          %v569 = vpop.f32.mrf.mxu0
          %570 = vmatprep.mubr.bf16.mxu0 0
          %571 = vmatmul.mubr.bf16.gmra.mxu0 %v509
          %v572 = vpop.f32.mrf.mxu0
          %v573 = vadd.f32 %v484, %v572
          %v574 = vpop.f32.mrf.mxu0
          %v575 = vpop.f32.mrf.mxu0
          %v576 = vadd.f32 %v484, %v575
          %v577 = vpop.f32.mrf.mxu0
          %578 = vmatprep.mubr.bf16.mxu0 0
          %579 = vmatmul.mubr.bf16.gmra.mxu0 %v512
          %v580 = vpop.f32.mrf.mxu0
          %v581 = vadd.f32 %v484, %v580
          %v582 = vpop.f32.mrf.mxu0
          %v583 = vpop.f32.mrf.mxu0
          %v584 = vadd.f32 %v484, %v583
          %v585 = vpop.f32.mrf.mxu0
          %586 = vdwg.mxu0
          %v587 = vpack.c.bf16 %v552, %v549
          %v588 = vpack.c.bf16 %v560, %v557
          %v589 = vpack.c.bf16 %v568, %v565
          %v590 = vpack.c.bf16 %v576, %v573
          %v591 = vpack.c.bf16 %v584, %v581
          %v597 = vunpack.c.l.b16 %v587
          %v598 = vunpack.c.h.b16 %v587
          %v599 = vunpack.c.l.b16 %v588
          %v600 = vunpack.c.h.b16 %v588
          %v601 = vunpack.c.l.b16 %v589
          %v602 = vunpack.c.h.b16 %v589
          %v603 = vunpack.c.l.b16 %v590
          %v604 = vunpack.c.h.b16 %v590
          %v605 = vunpack.c.l.b16 %v591
          %v606 = vunpack.c.h.b16 %v591
          %v607 = vpack.c.b16 %v597, %v597
          %v608 = vpack.c.b16 %v598, %v598
          %v609 = vpack.c.b16 %v599, %v599
          %v610 = vpack.c.b16 %v600, %v600
          %v611 = vpack.c.b16 %v601, %v601
          %v612 = vpack.c.b16 %v602, %v602
          %v613 = vpack.c.b16 %v603, %v603
          %v614 = vpack.c.b16 %v604, %v604
          %v615 = vpack.c.b16 %v605, %v605
          %v616 = vpack.c.b16 %v606, %v606
          %vm627 = vcmask 257024
          %628 = vst.msk [vmem:[#allocation2] sm:$0xf] %vm627, %v607
          %629 = vst.msk [vmem:[#allocation2 + $0x4] sm:$0xf] %vm627, %v608
          %630 = vst.msk [vmem:[#allocation2 + $0x8] sm:$0xf] %vm627, %v609
          %631 = vst.msk [vmem:[#allocation2 + $0xc] sm:$0xf] %vm627, %v610
          %632 = vst.msk [vmem:[#allocation2 + $0x10] sm:$0xf] %vm627, %v611
          %633 = vst.msk [vmem:[#allocation2 + $0x14] sm:$0xf] %vm627, %v612
          %634 = vst.msk [vmem:[#allocation2 + $0x18] sm:$0xf] %vm627, %v613
          %635 = vst.msk [vmem:[#allocation2 + $0x1c] sm:$0xf] %vm627, %v614
          %636 = vst.msk [vmem:[#allocation2 + $0x20] sm:$0xf] %vm627, %v615
          %637 = vst.msk [vmem:[#allocation2 + $0x24] sm:$0xf] %vm627, %v616
        $region68: #{tpu_custom_call.1} parent=63 // pred_fallthru
          _
        %v638 = vld [vmem:[%s442] sm:$0xff]
        %v639 = vld [vmem:[%s449] sm:$0xff]
        %v640 = vld [vmem:[%s5] sm:$0xff]
        %v641 = vld [vmem:[%s5 + $0x8] sm:$0xff]
        %v642 = vld [vmem:[%s5 + $0x10] sm:$0xff]
        %v643 = vld [vmem:[%s5 + $0x18] sm:$0xff]
        %v644 = vld [vmem:[%s6] sm:$0x1]
        %v646 = vlaneseq
        %v647 = vshrl.u32 %v646, 7
        %v648 = vsub.s32 0, %v647
        %v649 = vrot.slane %v644, %v648
        %vm651 = vcmask 261120
        %v653 = vsel %vm651, %v638, 0
        %655 = vmatprep.subr.mxu0 0.0
        %656 = vmatpush1.msra.mxu0 0.0
        %657 = vmatprep.subr.mxu0 0.0
        %658 = vmatpush1.msra.mxu0 0.0
        %659 = vmatprep.subr.mxu0 0.0
        %660 = vmatpush1.msra.mxu0 0.0
        %661 = vmatprep.subr.mxu0 0.0
        %662 = vmatpush1.msra.mxu0 0.0
        %663 = vmatprep.subr.mxu0 0.0
        %664 = vmatpush1.msra.mxu0 0.0
        %665 = vmatprep.subr.mxu0 0.0
        %666 = vmatpush1.msra.mxu0 0.0
        %667 = vmatprep.subr.mxu0 0.0
        %668 = vmatpush1.msra.mxu0 0.0
        %669 = vmatprep.subr.mxu0 0.0
        %670 = vmatpush1.msra.mxu0 0.0
        %671 = vmatprep.subr.mxu0 0.0
        %672 = vmatpush1.msra.mxu0 0.0
        %673 = vmatprep.subr.mxu0 0.0
        %674 = vmatpush1.msra.mxu0 0.0
        %675 = vmatprep.subr.mxu0 0.0
        %676 = vmatpush1.msra.mxu0 0.0
        %677 = vmatprep.subr.mxu0 0.0
        %678 = vmatpush1.msra.mxu0 0.0
        %679 = vmatprep.subr.mxu0 0.0
        %680 = vmatpush1.msra.mxu0 %v643
        %681 = vmatprep.subr.mxu0 0.0
        %682 = vmatpush1.msra.mxu0 %v642
        %683 = vmatprep.subr.mxu0 0.0
        %684 = vmatpush1.msra.mxu0 %v641
        %685 = vmatprep.subr.mxu0 0.0
        %686 = vmatpush1.msra.mxu0 %v640
        %687 = vmatprep.subr.mxu0 0.0
        %688 = vmatpush2.msra.mxu0 0.0
        %689 = vmatprep.subr.mxu0 0.0
        %690 = vmatpush2.msra.mxu0 0.0
        %691 = vmatprep.subr.mxu0 0.0
        %692 = vmatpush2.msra.mxu0 0.0
        %693 = vmatprep.subr.mxu0 0.0
        %694 = vmatpush2.msra.mxu0 0.0
        %695 = vmatprep.subr.mxu0 0.0
        %696 = vmatpush2.msra.mxu0 0.0
        %697 = vmatprep.subr.mxu0 0.0
        %698 = vmatpush2.msra.mxu0 0.0
        %699 = vmatprep.subr.mxu0 0.0
        %700 = vmatpush2.msra.mxu0 0.0
        %701 = vmatprep.subr.mxu0 0.0
        %702 = vmatpush2.msra.mxu0 0.0
        %703 = vmatprep.subr.mxu0 0.0
        %704 = vmatpush2.msra.mxu0 0.0
        %705 = vmatprep.subr.mxu0 0.0
        %706 = vmatpush2.msra.mxu0 0.0
        %707 = vmatprep.subr.mxu0 0.0
        %708 = vmatpush2.msra.mxu0 0.0
        %709 = vmatprep.subr.mxu0 0.0
        %710 = vmatpush2.msra.mxu0 0.0
        %711 = vmatprep.subr.mxu0 0.0
        %712 = vmatpush2.msra.mxu0 0.0
        %713 = vmatprep.subr.mxu0 0.0
        %714 = vmatpush2.msra.mxu0 0.0
        %715 = vmatprep.subr.mxu0 0.0
        %716 = vmatpush2.msra.mxu0 0.0
        %717 = vmatprep.subr.mxu0 0.0
        %718 = vmatpush2.msra.mxu0 0.0
        %719 = vmatprep.mubr.f32.mxu0 0.0
        %720 = vmatmul.mubr.f32.gmra.mxu0 %v653
        %v721 = vpop.f32.mrf.mxu0
        %v722 = vadd.f32 %v649, %v721
        %v723 = vpop.f32.mrf.mxu0
        %724 = vdwg.mxu0
        %v725 = vld [vmem:[%s7] sm:$0xff]
        %v726 = vld [vmem:[%s7 + $0x8] sm:$0xff]
        %v727 = vld [vmem:[%s7 + $0x10] sm:$0xff]
        %v728 = vld [vmem:[%s7 + $0x18] sm:$0xff]
        %v729 = vld [vmem:[%s8] sm:$0x1]
        %v731 = vlaneseq
        %v732 = vshrl.u32 %v731, 7
        %v733 = vsub.s32 0, %v732
        %v734 = vrot.slane %v729, %v733
        %736 = vmatprep.subr.mxu0 0.0
        %737 = vmatpush1.msra.mxu0 0.0
        %738 = vmatprep.subr.mxu0 0.0
        %739 = vmatpush1.msra.mxu0 0.0
        %740 = vmatprep.subr.mxu0 0.0
        %741 = vmatpush1.msra.mxu0 0.0
        %742 = vmatprep.subr.mxu0 0.0
        %743 = vmatpush1.msra.mxu0 0.0
        %744 = vmatprep.subr.mxu0 0.0
        %745 = vmatpush1.msra.mxu0 0.0
        %746 = vmatprep.subr.mxu0 0.0
        %747 = vmatpush1.msra.mxu0 0.0
        %748 = vmatprep.subr.mxu0 0.0
        %749 = vmatpush1.msra.mxu0 0.0
        %750 = vmatprep.subr.mxu0 0.0
        %751 = vmatpush1.msra.mxu0 0.0
        %752 = vmatprep.subr.mxu0 0.0
        %753 = vmatpush1.msra.mxu0 0.0
        %754 = vmatprep.subr.mxu0 0.0
        %755 = vmatpush1.msra.mxu0 0.0
        %756 = vmatprep.subr.mxu0 0.0
        %757 = vmatpush1.msra.mxu0 0.0
        %758 = vmatprep.subr.mxu0 0.0
        %759 = vmatpush1.msra.mxu0 0.0
        %760 = vmatprep.subr.mxu0 0.0
        %761 = vmatpush1.msra.mxu0 %v728
        %762 = vmatprep.subr.mxu0 0.0
        %763 = vmatpush1.msra.mxu0 %v727
        %764 = vmatprep.subr.mxu0 0.0
        %765 = vmatpush1.msra.mxu0 %v726
        %766 = vmatprep.subr.mxu0 0.0
        %767 = vmatpush1.msra.mxu0 %v725
        %768 = vmatprep.subr.mxu0 0.0
        %769 = vmatpush2.msra.mxu0 0.0
        %770 = vmatprep.subr.mxu0 0.0
        %771 = vmatpush2.msra.mxu0 0.0
        %772 = vmatprep.subr.mxu0 0.0
        %773 = vmatpush2.msra.mxu0 0.0
        %774 = vmatprep.subr.mxu0 0.0
        %775 = vmatpush2.msra.mxu0 0.0
        %776 = vmatprep.subr.mxu0 0.0
        %777 = vmatpush2.msra.mxu0 0.0
        %778 = vmatprep.subr.mxu0 0.0
        %779 = vmatpush2.msra.mxu0 0.0
        %780 = vmatprep.subr.mxu0 0.0
        %781 = vmatpush2.msra.mxu0 0.0
        %782 = vmatprep.subr.mxu0 0.0
        %783 = vmatpush2.msra.mxu0 0.0
        %784 = vmatprep.subr.mxu0 0.0
        %785 = vmatpush2.msra.mxu0 0.0
        %786 = vmatprep.subr.mxu0 0.0
        %787 = vmatpush2.msra.mxu0 0.0
        %788 = vmatprep.subr.mxu0 0.0
        %789 = vmatpush2.msra.mxu0 0.0
        %790 = vmatprep.subr.mxu0 0.0
        %791 = vmatpush2.msra.mxu0 0.0
        %792 = vmatprep.subr.mxu0 0.0
        %793 = vmatpush2.msra.mxu0 0.0
        %794 = vmatprep.subr.mxu0 0.0
        %795 = vmatpush2.msra.mxu0 0.0
        %796 = vmatprep.subr.mxu0 0.0
        %797 = vmatpush2.msra.mxu0 0.0
        %798 = vmatprep.subr.mxu0 0.0
        %799 = vmatpush2.msra.mxu0 0.0
        %800 = vmatprep.mubr.f32.mxu0 0.0
        %801 = vmatmul.mubr.f32.gmra.mxu0 %v653
        %v802 = vpop.f32.mrf.mxu0
        %v803 = vadd.f32 %v734, %v802
        %v804 = vpop.f32.mrf.mxu0
        %805 = vdwg.mxu0
        %v806 = vmul.f32 %v639, 8.0
        %v807 = vsub.f32 %v806, 0.5
        %v808 = vlaneseq
        %v809 = vand.u32 %v808, 127
        %v810 = vcvt.s32.f32 %v809
        %v811 = vadd.f32 %v810, 0.5
        %v812 = vmul.f32 %v811, 0.125
        %v813 = vfloor.f32 %v812
        %v814 = vmul.f32 %v813, 8.0
        %v815 = vsub.f32 %v810, %v814
        %v816 = vmul.f32 %v639, 4.0
        %v817 = vsub.f32 %v816, 0.5
        %v818 = vmul.f32 %v811, 0.25
        %v819 = vfloor.f32 %v818
        %v820 = vmul.f32 %v819, 4.0
        %v821 = vsub.f32 %v810, %v820
        %vm822 = vcmask 31744
        %v823 = vsel %vm822, %v803, -inf
        %824 = vmax.xlane.f32.xlu0 %v823
        %v825 = vpop.xlane.xlu0 %824
        %v826 = vsub.f32 %v803, %v825
        %v827 = vmul.f32 %v826, 1.442695
        %v828 = vpow.pop %v827
        %v829 = vsel %vm822, %v828, 0.0
        %830 = vadd.xlane.f32.xlu0 %v829
        %v831 = vpop.xlane.xlu0 %830
        %v832 = vrcp.pop %v831
        %v833 = vmul.f32 1.0, %v832
        %v834 = vmul.f32 %v828, %v833
        %v835 = vadd.f32 %v807, %v722
        %837 = vset.pattern.permute.xlu0 0
        %838 = vperm.xlu0 %837, %v835
        %v839 = vpop.permute.xlu0 %838
        %v841 = vsub.f32 %v839, %v815
        %v842 = vand.u32 2147483647, %v841
        %v843 = vsub.f32 1.0, %v842
        %v844 = vmax.f32 %v843, 0.0
        %845 = vset.pattern.permute.xlu0 1
        %846 = vperm.xlu0 %845, %v835
        %v847 = vpop.permute.xlu0 %846
        %v849 = vsub.f32 %v847, %v813
        %v850 = vand.u32 2147483647, %v849
        %v851 = vsub.f32 1.0, %v850
        %v852 = vmax.f32 %v851, 0.0
        %854 = vset.pattern.permute.xlu0 0
        %855 = vperm.xlu0 %854, %v834
        %v856 = vpop.permute.xlu0 %855
        %v858 = vmul.f32 %v856, %v852
        %v859 = vmul.f32 %v858, %v844
        %v860 = vadd.f32 %v859, 0.0
        %862 = vrot.lane.b32.xlu0 %v722, 126
        %v863 = vpop.permute.xlu0 %862
        %v865 = vadd.f32 %v807, %v863
        %867 = vset.pattern.permute.xlu0 0
        %868 = vperm.xlu0 %867, %v865
        %v869 = vpop.permute.xlu0 %868
        %v871 = vsub.f32 %v869, %v815
        %v872 = vand.u32 2147483647, %v871
        %v873 = vsub.f32 1.0, %v872
        %v874 = vmax.f32 %v873, 0.0
        %875 = vset.pattern.permute.xlu0 1
        %876 = vperm.xlu0 %875, %v865
        %v877 = vpop.permute.xlu0 %876
        %v879 = vsub.f32 %v877, %v813
        %v880 = vand.u32 2147483647, %v879
        %v881 = vsub.f32 1.0, %v880
        %v882 = vmax.f32 %v881, 0.0
        %883 = vset.pattern.permute.xlu0 1
        %884 = vperm.xlu0 %883, %v834
        %v885 = vpop.permute.xlu0 %884
        %v887 = vmul.f32 %v885, %v882
        %v888 = vmul.f32 %v887, %v874
        %v889 = vadd.f32 %v860, %v888
        %v890 = vld [vmem:[#allocation2] sm:$0xf]
        %v891 = vld [vmem:[#allocation2 + $0x4] sm:$0xf]
        %v892 = vld [vmem:[#allocation2 + $0x8] sm:$0xf]
        %v893 = vld [vmem:[#allocation2 + $0xc] sm:$0xf]
        %v894 = vld [vmem:[#allocation2 + $0x10] sm:$0xf]
        %v895 = vld [vmem:[#allocation2 + $0x14] sm:$0xf]
        %v896 = vld [vmem:[#allocation2 + $0x18] sm:$0xf]
        %v897 = vld [vmem:[#allocation2 + $0x1c] sm:$0xf]
        %v898 = vpack.c.bf16 %v889, %v889
        %v899 = vmul.f32 %v722, 0.5
        %901 = vrot.lane.b32.xlu0 %v899, 124
        %v902 = vpop.permute.xlu0 %901
        %v904 = vadd.f32 %v817, %v902
        %906 = vset.pattern.permute.xlu0 0
        %907 = vperm.xlu0 %906, %v904
        %v908 = vpop.permute.xlu0 %907
        %v910 = vsub.f32 %v908, %v821
        %v911 = vand.u32 2147483647, %v910
        %v912 = vsub.f32 1.0, %v911
        %v913 = vmax.f32 %v912, 0.0
        %914 = vset.pattern.permute.xlu0 1
        %915 = vperm.xlu0 %914, %v904
        %v916 = vpop.permute.xlu0 %915
        %v918 = vsub.f32 %v916, %v819
        %v919 = vand.u32 2147483647, %v918
        %v920 = vsub.f32 1.0, %v919
        %v921 = vmax.f32 %v920, 0.0
        %922 = vset.pattern.permute.xlu0 2
        %923 = vperm.xlu0 %922, %v834
        %v924 = vpop.permute.xlu0 %923
        %v926 = vmul.f32 %v924, %v921
        %v927 = vmul.f32 %v926, %v913
        %v928 = vadd.f32 %v927, 0.0
        %929 = vrot.lane.b32.xlu0 %v899, 122
        %v930 = vpop.permute.xlu0 %929
        %v932 = vadd.f32 %v817, %v930
        %934 = vset.pattern.permute.xlu0 0
        %935 = vperm.xlu0 %934, %v932
        %v936 = vpop.permute.xlu0 %935
        %v938 = vsub.f32 %v936, %v821
        %v939 = vand.u32 2147483647, %v938
        %v940 = vsub.f32 1.0, %v939
        %v941 = vmax.f32 %v940, 0.0
        %942 = vset.pattern.permute.xlu0 1
        %943 = vperm.xlu0 %942, %v932
        %v944 = vpop.permute.xlu0 %943
        %v946 = vsub.f32 %v944, %v819
        %v947 = vand.u32 2147483647, %v946
        %v948 = vsub.f32 1.0, %v947
        %v949 = vmax.f32 %v948, 0.0
        %950 = vset.pattern.permute.xlu0 3
        %951 = vperm.xlu0 %950, %v834
        %v952 = vpop.permute.xlu0 %951
        %v954 = vmul.f32 %v952, %v949
        %v955 = vmul.f32 %v954, %v941
        %v956 = vadd.f32 %v928, %v955
        %v957 = vld [vmem:[#allocation2 + $0x20] sm:$0xf]
        %v958 = vld [vmem:[#allocation2 + $0x24] sm:$0xf]
        %v959 = vpack.c.bf16 %v956, %v956
        %v962 = vunpack.c.l.b16 %v957
        %v963 = vunpack.c.l.b16 %v958
        %v964 = vpack.c.b16 %v963, %v962
        %vm966 = vcmask 130048
        %v968 = vsel %vm966, %v959, 0
        %970 = vmatprep.subr.bf16.mxu0 0
        %971 = vmatpush1.bf16.msra.mxu0 0
        %972 = vmatprep.subr.bf16.mxu0 0
        %973 = vmatpush1.bf16.msra.mxu0 0
        %974 = vmatprep.subr.bf16.mxu0 0
        %975 = vmatpush1.bf16.msra.mxu0 0
        %976 = vmatprep.subr.bf16.mxu0 0
        %977 = vmatpush1.bf16.msra.mxu0 0
        %978 = vmatprep.subr.bf16.mxu0 0
        %979 = vmatpush1.bf16.msra.mxu0 0
        %980 = vmatprep.subr.bf16.mxu0 0
        %981 = vmatpush1.bf16.msra.mxu0 0
        %982 = vmatprep.subr.bf16.mxu0 0
        %983 = vmatpush1.bf16.msra.mxu0 0
        %984 = vmatprep.subr.bf16.mxu0 0
        %985 = vmatpush1.bf16.msra.mxu0 %v964
        %986 = vmatprep.subr.bf16.mxu0 0
        %987 = vmatpush2.bf16.msra.mxu0 0
        %988 = vmatprep.subr.bf16.mxu0 0
        %989 = vmatpush2.bf16.msra.mxu0 0
        %990 = vmatprep.subr.bf16.mxu0 0
        %991 = vmatpush2.bf16.msra.mxu0 0
        %992 = vmatprep.subr.bf16.mxu0 0
        %993 = vmatpush2.bf16.msra.mxu0 0
        %994 = vmatprep.subr.bf16.mxu0 0
        %995 = vmatpush2.bf16.msra.mxu0 0
        %996 = vmatprep.subr.bf16.mxu0 0
        %997 = vmatpush2.bf16.msra.mxu0 0
        %998 = vmatprep.subr.bf16.mxu0 0
        %999 = vmatpush2.bf16.msra.mxu0 0
        %1000 = vmatprep.subr.bf16.mxu0 0
        %1001 = vmatpush2.bf16.msra.mxu0 0
        %1002 = vmatprep.mubr.bf16.mxu0 0
        %1003 = vmatmul.mubr.bf16.gmra.mxu0 %v968
        %v1004 = vpop.f32.mrf.mxu0
        %v1005 = vadd.f32 0.0, %v1004
        %v1006 = vpop.f32.mrf.mxu0
        %v1007 = vpop.f32.mrf.mxu0
        %v1008 = vpop.f32.mrf.mxu0
        %1009 = vdwg.mxu0
        %v1018 = vunpack.c.l.b16 %v890
        %v1019 = vunpack.c.l.b16 %v891
        %v1020 = vunpack.c.l.b16 %v892
        %v1021 = vunpack.c.l.b16 %v893
        %v1022 = vunpack.c.l.b16 %v894
        %v1023 = vunpack.c.l.b16 %v895
        %v1024 = vunpack.c.l.b16 %v896
        %v1025 = vunpack.c.l.b16 %v897
        %v1026 = vpack.c.b16 %v1019, %v1018
        %v1027 = vpack.c.b16 %v1021, %v1020
        %v1028 = vpack.c.b16 %v1023, %v1022
        %v1029 = vpack.c.b16 %v1025, %v1024
        %vm1034 = vcmask 523264
        %v1036 = vsel %vm1034, %v898, 0
        %1038 = vmatprep.subr.bf16.mxu0 0
        %1039 = vmatpush1.bf16.msra.mxu0 0
        %1040 = vmatprep.subr.bf16.mxu0 0
        %1041 = vmatpush1.bf16.msra.mxu0 0
        %1042 = vmatprep.subr.bf16.mxu0 0
        %1043 = vmatpush1.bf16.msra.mxu0 0
        %1044 = vmatprep.subr.bf16.mxu0 0
        %1045 = vmatpush1.bf16.msra.mxu0 0
        %1046 = vmatprep.subr.bf16.mxu0 0
        %1047 = vmatpush1.bf16.msra.mxu0 %v1029
        %1048 = vmatprep.subr.bf16.mxu0 0
        %1049 = vmatpush1.bf16.msra.mxu0 %v1028
        %1050 = vmatprep.subr.bf16.mxu0 0
        %1051 = vmatpush1.bf16.msra.mxu0 %v1027
        %1052 = vmatprep.subr.bf16.mxu0 0
        %1053 = vmatpush1.bf16.msra.mxu0 %v1026
        %1054 = vmatprep.subr.bf16.mxu0 0
        %1055 = vmatpush2.bf16.msra.mxu0 0
        %1056 = vmatprep.subr.bf16.mxu0 0
        %1057 = vmatpush2.bf16.msra.mxu0 0
        %1058 = vmatprep.subr.bf16.mxu0 0
        %1059 = vmatpush2.bf16.msra.mxu0 0
        %1060 = vmatprep.subr.bf16.mxu0 0
        %1061 = vmatpush2.bf16.msra.mxu0 0
        %1062 = vmatprep.subr.bf16.mxu0 0
        %1063 = vmatpush2.bf16.msra.mxu0 0
        %1064 = vmatprep.subr.bf16.mxu0 0
        %1065 = vmatpush2.bf16.msra.mxu0 0
        %1066 = vmatprep.subr.bf16.mxu0 0
        %1067 = vmatpush2.bf16.msra.mxu0 0
        %1068 = vmatprep.subr.bf16.mxu0 0
        %1069 = vmatpush2.bf16.msra.mxu0 0
        %1070 = vmatprep.mubr.bf16.mxu0 0
        %1071 = vmatmul.mubr.bf16.gmra.mxu0 %v1036
        %v1072 = vpop.f32.mrf.mxu0
        %v1073 = vadd.f32 %v1005, %v1072
        %v1074 = vpop.f32.mrf.mxu0
        %v1075 = vpop.f32.mrf.mxu0
        %v1076 = vpop.f32.mrf.mxu0
        %1077 = vdwg.mxu0
        %vm1078 = vcmask 64544
        %v1079 = vsel %vm1078, %v803, -inf
        %1080 = vmax.xlane.f32.xlu0 %v1079
        %v1081 = vpop.xlane.xlu0 %1080
        %v1082 = vsub.f32 %v803, %v1081
        %v1083 = vmul.f32 %v1082, 1.442695
        %v1084 = vpow.pop %v1083
        %1086 = vrot.lane.b32.xlu0 %v1084, 124
        %v1087 = vpop.permute.xlu0 %1086
        %v1089 = vsel %vm822, %v1087, 0.0
        %1090 = vadd.xlane.f32.xlu0 %v1089
        %v1091 = vpop.xlane.xlu0 %1090
        %v1092 = vrcp.pop %v1091
        %v1093 = vmul.f32 1.0, %v1092
        %v1094 = vmul.f32 %v1084, %v1093
        %1095 = vrot.lane.b32.xlu0 %v722, 120
        %v1096 = vpop.permute.xlu0 %1095
        %v1098 = vadd.f32 %v807, %v1096
        %1100 = vset.pattern.permute.xlu0 0
        %1101 = vperm.xlu0 %1100, %v1098
        %v1102 = vpop.permute.xlu0 %1101
        %v1104 = vsub.f32 %v1102, %v815
        %v1105 = vand.u32 2147483647, %v1104
        %v1106 = vsub.f32 1.0, %v1105
        %v1107 = vmax.f32 %v1106, 0.0
        %1108 = vset.pattern.permute.xlu0 1
        %1109 = vperm.xlu0 %1108, %v1098
        %v1110 = vpop.permute.xlu0 %1109
        %v1112 = vsub.f32 %v1110, %v813
        %v1113 = vand.u32 2147483647, %v1112
        %v1114 = vsub.f32 1.0, %v1113
        %v1115 = vmax.f32 %v1114, 0.0
        %1117 = vset.pattern.permute.xlu0 4
        %1118 = vperm.xlu0 %1117, %v1094
        %v1119 = vpop.permute.xlu0 %1118
        %v1121 = vmul.f32 %v1119, %v1115
        %v1122 = vmul.f32 %v1121, %v1107
        %v1123 = vadd.f32 %v1122, 0.0
        %1124 = vrot.lane.b32.xlu0 %v722, 118
        %v1125 = vpop.permute.xlu0 %1124
        %v1127 = vadd.f32 %v807, %v1125
        %1129 = vset.pattern.permute.xlu0 0
        %1130 = vperm.xlu0 %1129, %v1127
        %v1131 = vpop.permute.xlu0 %1130
        %v1133 = vsub.f32 %v1131, %v815
        %v1134 = vand.u32 2147483647, %v1133
        %v1135 = vsub.f32 1.0, %v1134
        %v1136 = vmax.f32 %v1135, 0.0
        %1137 = vset.pattern.permute.xlu0 1
        %1138 = vperm.xlu0 %1137, %v1127
        %v1139 = vpop.permute.xlu0 %1138
        %v1141 = vsub.f32 %v1139, %v813
        %v1142 = vand.u32 2147483647, %v1141
        %v1143 = vsub.f32 1.0, %v1142
        %v1144 = vmax.f32 %v1143, 0.0
        %1145 = vset.pattern.permute.xlu0 5
        %1146 = vperm.xlu0 %1145, %v1094
        %v1147 = vpop.permute.xlu0 %1146
        %v1149 = vmul.f32 %v1147, %v1144
        %v1150 = vmul.f32 %v1149, %v1136
        %v1151 = vadd.f32 %v1123, %v1150
        %v1152 = vpack.c.bf16 %v1151, %v1151
        %1153 = vrot.lane.b32.xlu0 %v899, 116
        %v1154 = vpop.permute.xlu0 %1153
        %v1156 = vadd.f32 %v817, %v1154
        %1158 = vset.pattern.permute.xlu0 0
        %1159 = vperm.xlu0 %1158, %v1156
        %v1160 = vpop.permute.xlu0 %1159
        %v1162 = vsub.f32 %v1160, %v821
        %v1163 = vand.u32 2147483647, %v1162
        %v1164 = vsub.f32 1.0, %v1163
        %v1165 = vmax.f32 %v1164, 0.0
        %1166 = vset.pattern.permute.xlu0 1
        %1167 = vperm.xlu0 %1166, %v1156
        %v1168 = vpop.permute.xlu0 %1167
        %v1170 = vsub.f32 %v1168, %v819
        %v1171 = vand.u32 2147483647, %v1170
        %v1172 = vsub.f32 1.0, %v1171
        %v1173 = vmax.f32 %v1172, 0.0
        %1174 = vset.pattern.permute.xlu0 6
        %1175 = vperm.xlu0 %1174, %v1094
        %v1176 = vpop.permute.xlu0 %1175
        %v1178 = vmul.f32 %v1176, %v1173
        %v1179 = vmul.f32 %v1178, %v1165
        %v1180 = vadd.f32 %v1179, 0.0
        %1181 = vrot.lane.b32.xlu0 %v899, 114
        %v1182 = vpop.permute.xlu0 %1181
        %v1184 = vadd.f32 %v817, %v1182
        %1186 = vset.pattern.permute.xlu0 0
        %1187 = vperm.xlu0 %1186, %v1184
        %v1188 = vpop.permute.xlu0 %1187
        %v1190 = vsub.f32 %v1188, %v821
        %v1191 = vand.u32 2147483647, %v1190
        %v1192 = vsub.f32 1.0, %v1191
        %v1193 = vmax.f32 %v1192, 0.0
        %1194 = vset.pattern.permute.xlu0 1
        %1195 = vperm.xlu0 %1194, %v1184
        %v1196 = vpop.permute.xlu0 %1195
        %v1198 = vsub.f32 %v1196, %v819
        %v1199 = vand.u32 2147483647, %v1198
        %v1200 = vsub.f32 1.0, %v1199
        %v1201 = vmax.f32 %v1200, 0.0
        %1202 = vset.pattern.permute.xlu0 7
        %1203 = vperm.xlu0 %1202, %v1094
        %v1204 = vpop.permute.xlu0 %1203
        %v1206 = vmul.f32 %v1204, %v1201
        %v1207 = vmul.f32 %v1206, %v1193
        %v1208 = vadd.f32 %v1180, %v1207
        %v1209 = vpack.c.bf16 %v1208, %v1208
        %1210 = vrot.lane.b32.xlu0 %v964, 120
        %v1211 = vpop.permute.xlu0 %1210
        %v1214 = vsel %vm966, %v1209, 0
        %1216 = vmatprep.subr.bf16.mxu0 0
        %1217 = vmatpush1.bf16.msra.mxu0 0
        %1218 = vmatprep.subr.bf16.mxu0 0
        %1219 = vmatpush1.bf16.msra.mxu0 0
        %1220 = vmatprep.subr.bf16.mxu0 0
        %1221 = vmatpush1.bf16.msra.mxu0 0
        %1222 = vmatprep.subr.bf16.mxu0 0
        %1223 = vmatpush1.bf16.msra.mxu0 0
        %1224 = vmatprep.subr.bf16.mxu0 0
        %1225 = vmatpush1.bf16.msra.mxu0 0
        %1226 = vmatprep.subr.bf16.mxu0 0
        %1227 = vmatpush1.bf16.msra.mxu0 0
        %1228 = vmatprep.subr.bf16.mxu0 0
        %1229 = vmatpush1.bf16.msra.mxu0 0
        %1230 = vmatprep.subr.bf16.mxu0 0
        %1231 = vmatpush1.bf16.msra.mxu0 %v1211
        %1232 = vmatprep.subr.bf16.mxu0 0
        %1233 = vmatpush2.bf16.msra.mxu0 0
        %1234 = vmatprep.subr.bf16.mxu0 0
        %1235 = vmatpush2.bf16.msra.mxu0 0
        %1236 = vmatprep.subr.bf16.mxu0 0
        %1237 = vmatpush2.bf16.msra.mxu0 0
        %1238 = vmatprep.subr.bf16.mxu0 0
        %1239 = vmatpush2.bf16.msra.mxu0 0
        %1240 = vmatprep.subr.bf16.mxu0 0
        %1241 = vmatpush2.bf16.msra.mxu0 0
        %1242 = vmatprep.subr.bf16.mxu0 0
        %1243 = vmatpush2.bf16.msra.mxu0 0
        %1244 = vmatprep.subr.bf16.mxu0 0
        %1245 = vmatpush2.bf16.msra.mxu0 0
        %1246 = vmatprep.subr.bf16.mxu0 0
        %1247 = vmatpush2.bf16.msra.mxu0 0
        %1248 = vmatprep.mubr.bf16.mxu0 0
        %1249 = vmatmul.mubr.bf16.gmra.mxu0 %v1214
        %v1250 = vpop.f32.mrf.mxu0
        %v1251 = vadd.f32 0.0, %v1250
        %v1252 = vpop.f32.mrf.mxu0
        %v1253 = vpop.f32.mrf.mxu0
        %v1254 = vpop.f32.mrf.mxu0
        %1255 = vdwg.mxu0
        %1256 = vrot.lane.b32.xlu0 %v1026, 120
        %v1257 = vpop.permute.xlu0 %1256
        %1258 = vrot.lane.b32.xlu0 %v1027, 120
        %v1259 = vpop.permute.xlu0 %1258
        %1260 = vrot.lane.b32.xlu0 %v1028, 120
        %v1261 = vpop.permute.xlu0 %1260
        %1262 = vrot.lane.b32.xlu0 %v1029, 120
        %v1263 = vpop.permute.xlu0 %1262
        %v1269 = vsel %vm1034, %v1152, 0
        %1271 = vmatprep.subr.bf16.mxu0 0
        %1272 = vmatpush1.bf16.msra.mxu0 0
        %1273 = vmatprep.subr.bf16.mxu0 0
        %1274 = vmatpush1.bf16.msra.mxu0 0
        %1275 = vmatprep.subr.bf16.mxu0 0
        %1276 = vmatpush1.bf16.msra.mxu0 0
        %1277 = vmatprep.subr.bf16.mxu0 0
        %1278 = vmatpush1.bf16.msra.mxu0 0
        %1279 = vmatprep.subr.bf16.mxu0 0
        %1280 = vmatpush1.bf16.msra.mxu0 %v1263
        %1281 = vmatprep.subr.bf16.mxu0 0
        %1282 = vmatpush1.bf16.msra.mxu0 %v1261
        %1283 = vmatprep.subr.bf16.mxu0 0
        %1284 = vmatpush1.bf16.msra.mxu0 %v1259
        %1285 = vmatprep.subr.bf16.mxu0 0
        %1286 = vmatpush1.bf16.msra.mxu0 %v1257
        %1287 = vmatprep.subr.bf16.mxu0 0
        %1288 = vmatpush2.bf16.msra.mxu0 0
        %1289 = vmatprep.subr.bf16.mxu0 0
        %1290 = vmatpush2.bf16.msra.mxu0 0
        %1291 = vmatprep.subr.bf16.mxu0 0
        %1292 = vmatpush2.bf16.msra.mxu0 0
        %1293 = vmatprep.subr.bf16.mxu0 0
        %1294 = vmatpush2.bf16.msra.mxu0 0
        %1295 = vmatprep.subr.bf16.mxu0 0
        %1296 = vmatpush2.bf16.msra.mxu0 0
        %1297 = vmatprep.subr.bf16.mxu0 0
        %1298 = vmatpush2.bf16.msra.mxu0 0
        %1299 = vmatprep.subr.bf16.mxu0 0
        %1300 = vmatpush2.bf16.msra.mxu0 0
        %1301 = vmatprep.subr.bf16.mxu0 0
        %1302 = vmatpush2.bf16.msra.mxu0 0
        %1303 = vmatprep.mubr.bf16.mxu0 0
        %1304 = vmatmul.mubr.bf16.gmra.mxu0 %v1269
        %v1305 = vpop.f32.mrf.mxu0
        %v1306 = vadd.f32 %v1251, %v1305
        %v1307 = vpop.f32.mrf.mxu0
        %v1308 = vpop.f32.mrf.mxu0
        %v1309 = vpop.f32.mrf.mxu0
        %1310 = vdwg.mxu0
        %vm1311 = vcmask 97344
        %v1312 = vsel %vm1311, %v803, -inf
        %1313 = vmax.xlane.f32.xlu0 %v1312
        %v1314 = vpop.xlane.xlu0 %1313
        %v1315 = vsub.f32 %v803, %v1314
        %v1316 = vmul.f32 %v1315, 1.442695
        %v1317 = vpow.pop %v1316
        %1319 = vrot.lane.b32.xlu0 %v1317, 120
        %v1320 = vpop.permute.xlu0 %1319
        %v1322 = vsel %vm822, %v1320, 0.0
        %1323 = vadd.xlane.f32.xlu0 %v1322
        %v1324 = vpop.xlane.xlu0 %1323
        %v1325 = vrcp.pop %v1324
        %v1326 = vmul.f32 1.0, %v1325
        %v1327 = vmul.f32 %v1317, %v1326
        %1328 = vrot.lane.b32.xlu0 %v722, 112
        %v1329 = vpop.permute.xlu0 %1328
        %v1331 = vadd.f32 %v807, %v1329
        %1333 = vset.pattern.permute.xlu0 0
        %1334 = vperm.xlu0 %1333, %v1331
        %v1335 = vpop.permute.xlu0 %1334
        %v1337 = vsub.f32 %v1335, %v815
        %v1338 = vand.u32 2147483647, %v1337
        %v1339 = vsub.f32 1.0, %v1338
        %v1340 = vmax.f32 %v1339, 0.0
        %1341 = vset.pattern.permute.xlu0 1
        %1342 = vperm.xlu0 %1341, %v1331
        %v1343 = vpop.permute.xlu0 %1342
        %v1345 = vsub.f32 %v1343, %v813
        %v1346 = vand.u32 2147483647, %v1345
        %v1347 = vsub.f32 1.0, %v1346
        %v1348 = vmax.f32 %v1347, 0.0
        %1350 = vset.pattern.permute.xlu0 8
        %1351 = vperm.xlu0 %1350, %v1327
        %v1352 = vpop.permute.xlu0 %1351
        %v1354 = vmul.f32 %v1352, %v1348
        %v1355 = vmul.f32 %v1354, %v1340
        %v1356 = vadd.f32 %v1355, 0.0
        %1357 = vrot.lane.b32.xlu0 %v722, 110
        %v1358 = vpop.permute.xlu0 %1357
        %v1360 = vadd.f32 %v807, %v1358
        %1362 = vset.pattern.permute.xlu0 0
        %1363 = vperm.xlu0 %1362, %v1360
        %v1364 = vpop.permute.xlu0 %1363
        %v1366 = vsub.f32 %v1364, %v815
        %v1367 = vand.u32 2147483647, %v1366
        %v1368 = vsub.f32 1.0, %v1367
        %v1369 = vmax.f32 %v1368, 0.0
        %1370 = vset.pattern.permute.xlu0 1
        %1371 = vperm.xlu0 %1370, %v1360
        %v1372 = vpop.permute.xlu0 %1371
        %v1374 = vsub.f32 %v1372, %v813
        %v1375 = vand.u32 2147483647, %v1374
        %v1376 = vsub.f32 1.0, %v1375
        %v1377 = vmax.f32 %v1376, 0.0
        %1378 = vset.pattern.permute.xlu0 9
        %1379 = vperm.xlu0 %1378, %v1327
        %v1380 = vpop.permute.xlu0 %1379
        %v1382 = vmul.f32 %v1380, %v1377
        %v1383 = vmul.f32 %v1382, %v1369
        %v1384 = vadd.f32 %v1356, %v1383
        %v1385 = vpack.c.bf16 %v1384, %v1384
        %1386 = vrot.lane.b32.xlu0 %v899, 108
        %v1387 = vpop.permute.xlu0 %1386
        %v1389 = vadd.f32 %v817, %v1387
        %1391 = vset.pattern.permute.xlu0 0
        %1392 = vperm.xlu0 %1391, %v1389
        %v1393 = vpop.permute.xlu0 %1392
        %v1395 = vsub.f32 %v1393, %v821
        %v1396 = vand.u32 2147483647, %v1395
        %v1397 = vsub.f32 1.0, %v1396
        %v1398 = vmax.f32 %v1397, 0.0
        %1399 = vset.pattern.permute.xlu0 1
        %1400 = vperm.xlu0 %1399, %v1389
        %v1401 = vpop.permute.xlu0 %1400
        %v1403 = vsub.f32 %v1401, %v819
        %v1404 = vand.u32 2147483647, %v1403
        %v1405 = vsub.f32 1.0, %v1404
        %v1406 = vmax.f32 %v1405, 0.0
        %1407 = vset.pattern.permute.xlu0 10
        %1408 = vperm.xlu0 %1407, %v1327
        %v1409 = vpop.permute.xlu0 %1408
        %v1411 = vmul.f32 %v1409, %v1406
        %v1412 = vmul.f32 %v1411, %v1398
        %v1413 = vadd.f32 %v1412, 0.0
        %1414 = vrot.lane.b32.xlu0 %v899, 106
        %v1415 = vpop.permute.xlu0 %1414
        %v1417 = vadd.f32 %v817, %v1415
        %1419 = vset.pattern.permute.xlu0 0
        %1420 = vperm.xlu0 %1419, %v1417
        %v1421 = vpop.permute.xlu0 %1420
        %v1423 = vsub.f32 %v1421, %v821
        %v1424 = vand.u32 2147483647, %v1423
        %v1425 = vsub.f32 1.0, %v1424
        %v1426 = vmax.f32 %v1425, 0.0
        %1427 = vset.pattern.permute.xlu0 1
        %1428 = vperm.xlu0 %1427, %v1417
        %v1429 = vpop.permute.xlu0 %1428
        %v1431 = vsub.f32 %v1429, %v819
        %v1432 = vand.u32 2147483647, %v1431
        %v1433 = vsub.f32 1.0, %v1432
        %v1434 = vmax.f32 %v1433, 0.0
        %1435 = vset.pattern.permute.xlu0 11
        %1436 = vperm.xlu0 %1435, %v1327
        %v1437 = vpop.permute.xlu0 %1436
        %v1439 = vmul.f32 %v1437, %v1434
        %v1440 = vmul.f32 %v1439, %v1426
        %v1441 = vadd.f32 %v1413, %v1440
        %v1442 = vpack.c.bf16 %v1441, %v1441
        %1443 = vrot.lane.b32.xlu0 %v964, 112
        %v1444 = vpop.permute.xlu0 %1443
        %v1447 = vsel %vm966, %v1442, 0
        %1449 = vmatprep.subr.bf16.mxu0 0
        %1450 = vmatpush1.bf16.msra.mxu0 0
        %1451 = vmatprep.subr.bf16.mxu0 0
        %1452 = vmatpush1.bf16.msra.mxu0 0
        %1453 = vmatprep.subr.bf16.mxu0 0
        %1454 = vmatpush1.bf16.msra.mxu0 0
        %1455 = vmatprep.subr.bf16.mxu0 0
        %1456 = vmatpush1.bf16.msra.mxu0 0
        %1457 = vmatprep.subr.bf16.mxu0 0
        %1458 = vmatpush1.bf16.msra.mxu0 0
        %1459 = vmatprep.subr.bf16.mxu0 0
        %1460 = vmatpush1.bf16.msra.mxu0 0
        %1461 = vmatprep.subr.bf16.mxu0 0
        %1462 = vmatpush1.bf16.msra.mxu0 0
        %1463 = vmatprep.subr.bf16.mxu0 0
        %1464 = vmatpush1.bf16.msra.mxu0 %v1444
        %1465 = vmatprep.subr.bf16.mxu0 0
        %1466 = vmatpush2.bf16.msra.mxu0 0
        %1467 = vmatprep.subr.bf16.mxu0 0
        %1468 = vmatpush2.bf16.msra.mxu0 0
        %1469 = vmatprep.subr.bf16.mxu0 0
        %1470 = vmatpush2.bf16.msra.mxu0 0
        %1471 = vmatprep.subr.bf16.mxu0 0
        %1472 = vmatpush2.bf16.msra.mxu0 0
        %1473 = vmatprep.subr.bf16.mxu0 0
        %1474 = vmatpush2.bf16.msra.mxu0 0
        %1475 = vmatprep.subr.bf16.mxu0 0
        %1476 = vmatpush2.bf16.msra.mxu0 0
        %1477 = vmatprep.subr.bf16.mxu0 0
        %1478 = vmatpush2.bf16.msra.mxu0 0
        %1479 = vmatprep.subr.bf16.mxu0 0
        %1480 = vmatpush2.bf16.msra.mxu0 0
        %1481 = vmatprep.mubr.bf16.mxu0 0
        %1482 = vmatmul.mubr.bf16.gmra.mxu0 %v1447
        %v1483 = vpop.f32.mrf.mxu0
        %v1484 = vadd.f32 0.0, %v1483
        %v1485 = vpop.f32.mrf.mxu0
        %v1486 = vpop.f32.mrf.mxu0
        %v1487 = vpop.f32.mrf.mxu0
        %1488 = vdwg.mxu0
        %1489 = vrot.lane.b32.xlu0 %v1026, 112
        %v1490 = vpop.permute.xlu0 %1489
        %1491 = vrot.lane.b32.xlu0 %v1027, 112
        %v1492 = vpop.permute.xlu0 %1491
        %1493 = vrot.lane.b32.xlu0 %v1028, 112
        %v1494 = vpop.permute.xlu0 %1493
        %1495 = vrot.lane.b32.xlu0 %v1029, 112
        %v1496 = vpop.permute.xlu0 %1495
        %v1502 = vsel %vm1034, %v1385, 0
        %1504 = vmatprep.subr.bf16.mxu0 0
        %1505 = vmatpush1.bf16.msra.mxu0 0
        %1506 = vmatprep.subr.bf16.mxu0 0
        %1507 = vmatpush1.bf16.msra.mxu0 0
        %1508 = vmatprep.subr.bf16.mxu0 0
        %1509 = vmatpush1.bf16.msra.mxu0 0
        %1510 = vmatprep.subr.bf16.mxu0 0
        %1511 = vmatpush1.bf16.msra.mxu0 0
        %1512 = vmatprep.subr.bf16.mxu0 0
        %1513 = vmatpush1.bf16.msra.mxu0 %v1496
        %1514 = vmatprep.subr.bf16.mxu0 0
        %1515 = vmatpush1.bf16.msra.mxu0 %v1494
        %1516 = vmatprep.subr.bf16.mxu0 0
        %1517 = vmatpush1.bf16.msra.mxu0 %v1492
        %1518 = vmatprep.subr.bf16.mxu0 0
        %1519 = vmatpush1.bf16.msra.mxu0 %v1490
        %1520 = vmatprep.subr.bf16.mxu0 0
        %1521 = vmatpush2.bf16.msra.mxu0 0
        %1522 = vmatprep.subr.bf16.mxu0 0
        %1523 = vmatpush2.bf16.msra.mxu0 0
        %1524 = vmatprep.subr.bf16.mxu0 0
        %1525 = vmatpush2.bf16.msra.mxu0 0
        %1526 = vmatprep.subr.bf16.mxu0 0
        %1527 = vmatpush2.bf16.msra.mxu0 0
        %1528 = vmatprep.subr.bf16.mxu0 0
        %1529 = vmatpush2.bf16.msra.mxu0 0
        %1530 = vmatprep.subr.bf16.mxu0 0
        %1531 = vmatpush2.bf16.msra.mxu0 0
        %1532 = vmatprep.subr.bf16.mxu0 0
        %1533 = vmatpush2.bf16.msra.mxu0 0
        %1534 = vmatprep.subr.bf16.mxu0 0
        %1535 = vmatpush2.bf16.msra.mxu0 0
        %1536 = vmatprep.mubr.bf16.mxu0 0
        %1537 = vmatmul.mubr.bf16.gmra.mxu0 %v1502
        %v1538 = vpop.f32.mrf.mxu0
        %v1539 = vadd.f32 %v1484, %v1538
        %v1540 = vpop.f32.mrf.mxu0
        %v1541 = vpop.f32.mrf.mxu0
        %v1542 = vpop.f32.mrf.mxu0
        %1543 = vdwg.mxu0
        %vm1544 = vcmask 130144
        %v1545 = vsel %vm1544, %v803, -inf
        %1546 = vmax.xlane.f32.xlu0 %v1545
        %v1547 = vpop.xlane.xlu0 %1546
        %v1548 = vsub.f32 %v803, %v1547
        %v1549 = vmul.f32 %v1548, 1.442695
        %v1550 = vpow.pop %v1549
        %1552 = vrot.lane.b32.xlu0 %v1550, 116
        %v1553 = vpop.permute.xlu0 %1552
        %v1555 = vsel %vm822, %v1553, 0.0
        %1556 = vadd.xlane.f32.xlu0 %v1555
        %v1557 = vpop.xlane.xlu0 %1556
        %v1558 = vrcp.pop %v1557
        %v1559 = vmul.f32 1.0, %v1558
        %v1560 = vmul.f32 %v1550, %v1559
        %1561 = vrot.lane.b32.xlu0 %v722, 104
        %v1562 = vpop.permute.xlu0 %1561
        %v1564 = vadd.f32 %v807, %v1562
        %1566 = vset.pattern.permute.xlu0 0
        %1567 = vperm.xlu0 %1566, %v1564
        %v1568 = vpop.permute.xlu0 %1567
        %v1570 = vsub.f32 %v1568, %v815
        %v1571 = vand.u32 2147483647, %v1570
        %v1572 = vsub.f32 1.0, %v1571
        %v1573 = vmax.f32 %v1572, 0.0
        %1574 = vset.pattern.permute.xlu0 1
        %1575 = vperm.xlu0 %1574, %v1564
        %v1576 = vpop.permute.xlu0 %1575
        %v1578 = vsub.f32 %v1576, %v813
        %v1579 = vand.u32 2147483647, %v1578
        %v1580 = vsub.f32 1.0, %v1579
        %v1581 = vmax.f32 %v1580, 0.0
        %1583 = vset.pattern.permute.xlu0 12
        %1584 = vperm.xlu0 %1583, %v1560
        %v1585 = vpop.permute.xlu0 %1584
        %v1587 = vmul.f32 %v1585, %v1581
        %v1588 = vmul.f32 %v1587, %v1573
        %v1589 = vadd.f32 %v1588, 0.0
        %1590 = vrot.lane.b32.xlu0 %v722, 102
        %v1591 = vpop.permute.xlu0 %1590
        %v1593 = vadd.f32 %v807, %v1591
        %1595 = vset.pattern.permute.xlu0 0
        %1596 = vperm.xlu0 %1595, %v1593
        %v1597 = vpop.permute.xlu0 %1596
        %v1599 = vsub.f32 %v1597, %v815
        %v1600 = vand.u32 2147483647, %v1599
        %v1601 = vsub.f32 1.0, %v1600
        %v1602 = vmax.f32 %v1601, 0.0
        %1603 = vset.pattern.permute.xlu0 1
        %1604 = vperm.xlu0 %1603, %v1593
        %v1605 = vpop.permute.xlu0 %1604
        %v1607 = vsub.f32 %v1605, %v813
        %v1608 = vand.u32 2147483647, %v1607
        %v1609 = vsub.f32 1.0, %v1608
        %v1610 = vmax.f32 %v1609, 0.0
        %1611 = vset.pattern.permute.xlu0 13
        %1612 = vperm.xlu0 %1611, %v1560
        %v1613 = vpop.permute.xlu0 %1612
        %v1615 = vmul.f32 %v1613, %v1610
        %v1616 = vmul.f32 %v1615, %v1602
        %v1617 = vadd.f32 %v1589, %v1616
        %v1618 = vpack.c.bf16 %v1617, %v1617
        %1619 = vrot.lane.b32.xlu0 %v899, 100
        %v1620 = vpop.permute.xlu0 %1619
        %v1622 = vadd.f32 %v817, %v1620
        %1624 = vset.pattern.permute.xlu0 0
        %1625 = vperm.xlu0 %1624, %v1622
        %v1626 = vpop.permute.xlu0 %1625
        %v1628 = vsub.f32 %v1626, %v821
        %v1629 = vand.u32 2147483647, %v1628
        %v1630 = vsub.f32 1.0, %v1629
        %v1631 = vmax.f32 %v1630, 0.0
        %1632 = vset.pattern.permute.xlu0 1
        %1633 = vperm.xlu0 %1632, %v1622
        %v1634 = vpop.permute.xlu0 %1633
        %v1636 = vsub.f32 %v1634, %v819
        %v1637 = vand.u32 2147483647, %v1636
        %v1638 = vsub.f32 1.0, %v1637
        %v1639 = vmax.f32 %v1638, 0.0
        %1640 = vset.pattern.permute.xlu0 14
        %1641 = vperm.xlu0 %1640, %v1560
        %v1642 = vpop.permute.xlu0 %1641
        %v1644 = vmul.f32 %v1642, %v1639
        %v1645 = vmul.f32 %v1644, %v1631
        %v1646 = vadd.f32 %v1645, 0.0
        %1647 = vrot.lane.b32.xlu0 %v899, 98
        %v1648 = vpop.permute.xlu0 %1647
        %v1650 = vadd.f32 %v817, %v1648
        %1652 = vset.pattern.permute.xlu0 0
        %1653 = vperm.xlu0 %1652, %v1650
        %v1654 = vpop.permute.xlu0 %1653
        %v1656 = vsub.f32 %v1654, %v821
        %v1657 = vand.u32 2147483647, %v1656
        %v1658 = vsub.f32 1.0, %v1657
        %v1659 = vmax.f32 %v1658, 0.0
        %1660 = vset.pattern.permute.xlu0 1
        %1661 = vperm.xlu0 %1660, %v1650
        %v1662 = vpop.permute.xlu0 %1661
        %v1664 = vsub.f32 %v1662, %v819
        %v1665 = vand.u32 2147483647, %v1664
        %v1666 = vsub.f32 1.0, %v1665
        %v1667 = vmax.f32 %v1666, 0.0
        %1668 = vset.pattern.permute.xlu0 15
        %1669 = vperm.xlu0 %1668, %v1560
        %v1670 = vpop.permute.xlu0 %1669
        %v1672 = vmul.f32 %v1670, %v1667
        %v1673 = vmul.f32 %v1672, %v1659
        %v1674 = vadd.f32 %v1646, %v1673
        %v1675 = vpack.c.bf16 %v1674, %v1674
        %1676 = vrot.lane.b32.xlu0 %v964, 104
        %v1677 = vpop.permute.xlu0 %1676
        %v1680 = vsel %vm966, %v1675, 0
        %1682 = vmatprep.subr.bf16.mxu0 0
        %1683 = vmatpush1.bf16.msra.mxu0 0
        %1684 = vmatprep.subr.bf16.mxu0 0
        %1685 = vmatpush1.bf16.msra.mxu0 0
        %1686 = vmatprep.subr.bf16.mxu0 0
        %1687 = vmatpush1.bf16.msra.mxu0 0
        %1688 = vmatprep.subr.bf16.mxu0 0
        %1689 = vmatpush1.bf16.msra.mxu0 0
        %1690 = vmatprep.subr.bf16.mxu0 0
        %1691 = vmatpush1.bf16.msra.mxu0 0
        %1692 = vmatprep.subr.bf16.mxu0 0
        %1693 = vmatpush1.bf16.msra.mxu0 0
        %1694 = vmatprep.subr.bf16.mxu0 0
        %1695 = vmatpush1.bf16.msra.mxu0 0
        %1696 = vmatprep.subr.bf16.mxu0 0
        %1697 = vmatpush1.bf16.msra.mxu0 %v1677
        %1698 = vmatprep.subr.bf16.mxu0 0
        %1699 = vmatpush2.bf16.msra.mxu0 0
        %1700 = vmatprep.subr.bf16.mxu0 0
        %1701 = vmatpush2.bf16.msra.mxu0 0
        %1702 = vmatprep.subr.bf16.mxu0 0
        %1703 = vmatpush2.bf16.msra.mxu0 0
        %1704 = vmatprep.subr.bf16.mxu0 0
        %1705 = vmatpush2.bf16.msra.mxu0 0
        %1706 = vmatprep.subr.bf16.mxu0 0
        %1707 = vmatpush2.bf16.msra.mxu0 0
        %1708 = vmatprep.subr.bf16.mxu0 0
        %1709 = vmatpush2.bf16.msra.mxu0 0
        %1710 = vmatprep.subr.bf16.mxu0 0
        %1711 = vmatpush2.bf16.msra.mxu0 0
        %1712 = vmatprep.subr.bf16.mxu0 0
        %1713 = vmatpush2.bf16.msra.mxu0 0
        %1714 = vmatprep.mubr.bf16.mxu0 0
        %1715 = vmatmul.mubr.bf16.gmra.mxu0 %v1680
        %v1716 = vpop.f32.mrf.mxu0
        %v1717 = vadd.f32 0.0, %v1716
        %v1718 = vpop.f32.mrf.mxu0
        %v1719 = vpop.f32.mrf.mxu0
        %v1720 = vpop.f32.mrf.mxu0
        %1721 = vdwg.mxu0
        %1722 = vrot.lane.b32.xlu0 %v1026, 104
        %v1723 = vpop.permute.xlu0 %1722
        %1724 = vrot.lane.b32.xlu0 %v1027, 104
        %v1725 = vpop.permute.xlu0 %1724
        %1726 = vrot.lane.b32.xlu0 %v1028, 104
        %v1727 = vpop.permute.xlu0 %1726
        %1728 = vrot.lane.b32.xlu0 %v1029, 104
        %v1729 = vpop.permute.xlu0 %1728
        %v1735 = vsel %vm1034, %v1618, 0
        %1737 = vmatprep.subr.bf16.mxu0 0
        %1738 = vmatpush1.bf16.msra.mxu0 0
        %1739 = vmatprep.subr.bf16.mxu0 0
        %1740 = vmatpush1.bf16.msra.mxu0 0
        %1741 = vmatprep.subr.bf16.mxu0 0
        %1742 = vmatpush1.bf16.msra.mxu0 0
        %1743 = vmatprep.subr.bf16.mxu0 0
        %1744 = vmatpush1.bf16.msra.mxu0 0
        %1745 = vmatprep.subr.bf16.mxu0 0
        %1746 = vmatpush1.bf16.msra.mxu0 %v1729
        %1747 = vmatprep.subr.bf16.mxu0 0
        %1748 = vmatpush1.bf16.msra.mxu0 %v1727
        %1749 = vmatprep.subr.bf16.mxu0 0
        %1750 = vmatpush1.bf16.msra.mxu0 %v1725
        %1751 = vmatprep.subr.bf16.mxu0 0
        %1752 = vmatpush1.bf16.msra.mxu0 %v1723
        %1753 = vmatprep.subr.bf16.mxu0 0
        %1754 = vmatpush2.bf16.msra.mxu0 0
        %1755 = vmatprep.subr.bf16.mxu0 0
        %1756 = vmatpush2.bf16.msra.mxu0 0
        %1757 = vmatprep.subr.bf16.mxu0 0
        %1758 = vmatpush2.bf16.msra.mxu0 0
        %1759 = vmatprep.subr.bf16.mxu0 0
        %1760 = vmatpush2.bf16.msra.mxu0 0
        %1761 = vmatprep.subr.bf16.mxu0 0
        %1762 = vmatpush2.bf16.msra.mxu0 0
        %1763 = vmatprep.subr.bf16.mxu0 0
        %1764 = vmatpush2.bf16.msra.mxu0 0
        %1765 = vmatprep.subr.bf16.mxu0 0
        %1766 = vmatpush2.bf16.msra.mxu0 0
        %1767 = vmatprep.subr.bf16.mxu0 0
        %1768 = vmatpush2.bf16.msra.mxu0 0
        %1769 = vmatprep.mubr.bf16.mxu0 0
        %1770 = vmatmul.mubr.bf16.gmra.mxu0 %v1735
        %v1771 = vpop.f32.mrf.mxu0
        %v1772 = vadd.f32 %v1717, %v1771
        %v1773 = vpop.f32.mrf.mxu0
        %v1774 = vpop.f32.mrf.mxu0
        %v1775 = vpop.f32.mrf.mxu0
        %1776 = vdwg.mxu0
        %1778 = vrot.lane.b32.xlu0 %v1306, 8
        %v1779 = vpop.permute.xlu0 %1778
        %1782 = vrot.lane.b32.xlu0 %v1539, 16
        %v1783 = vpop.permute.xlu0 %1782
        %1786 = vrot.lane.b32.xlu0 %v1772, 24
        %v1787 = vpop.permute.xlu0 %1786
        %vm1789 = vcmask 64512
        %v1790 = vsel %vm1789, %v1073, %v1779
        %v1791 = vsel %vm966, %v1790, %v1783
        %vm1792 = vcmask 195584
        %v1793 = vsel %vm1792, %v1791, %v1787
        %v1794 = vpack.c.bf16 %v1793, %v1793
        %v1795 = vld [vmem:[%s9] sm:$0xf]
        %v1796 = vld [vmem:[%s9 + $0x4] sm:$0xf]
        %v1797 = vld [vmem:[%s9 + $0x8] sm:$0xf]
        %v1798 = vld [vmem:[%s9 + $0xc] sm:$0xf]
        %v1799 = vld [vmem:[%s10] sm:$0x1]
        %v1801 = vlaneseq
        %v1802 = vshrl.u32 %v1801, 7
        %v1803 = vsub.s32 0, %v1802
        %v1804 = vrot.slane %v1799, %v1803
        %v1810 = vunpack.c.l.b16 %v1795
        %v1811 = vunpack.c.l.b16 %v1796
        %v1812 = vunpack.c.l.b16 %v1797
        %v1813 = vunpack.c.l.b16 %v1798
        %v1814 = vpack.c.b16 %v1811, %v1810
        %v1815 = vpack.c.b16 %v1813, %v1812
        %v1819 = vsel %vm651, %v1794, 0
        %1821 = vmatprep.subr.bf16.mxu0 0
        %1822 = vmatpush1.bf16.msra.mxu0 0
        %1823 = vmatprep.subr.bf16.mxu0 0
        %1824 = vmatpush1.bf16.msra.mxu0 0
        %1825 = vmatprep.subr.bf16.mxu0 0
        %1826 = vmatpush1.bf16.msra.mxu0 0
        %1827 = vmatprep.subr.bf16.mxu0 0
        %1828 = vmatpush1.bf16.msra.mxu0 0
        %1829 = vmatprep.subr.bf16.mxu0 0
        %1830 = vmatpush1.bf16.msra.mxu0 0
        %1831 = vmatprep.subr.bf16.mxu0 0
        %1832 = vmatpush1.bf16.msra.mxu0 0
        %1833 = vmatprep.subr.bf16.mxu0 0
        %1834 = vmatpush1.bf16.msra.mxu0 %v1815
        %1835 = vmatprep.subr.bf16.mxu0 0
        %1836 = vmatpush1.bf16.msra.mxu0 %v1814
        %1837 = vmatprep.subr.bf16.mxu0 0
        %1838 = vmatpush2.bf16.msra.mxu0 0
        %1839 = vmatprep.subr.bf16.mxu0 0
        %1840 = vmatpush2.bf16.msra.mxu0 0
        %1841 = vmatprep.subr.bf16.mxu0 0
        %1842 = vmatpush2.bf16.msra.mxu0 0
        %1843 = vmatprep.subr.bf16.mxu0 0
        %1844 = vmatpush2.bf16.msra.mxu0 0
        %1845 = vmatprep.subr.bf16.mxu0 0
        %1846 = vmatpush2.bf16.msra.mxu0 0
        %1847 = vmatprep.subr.bf16.mxu0 0
        %1848 = vmatpush2.bf16.msra.mxu0 0
        %1849 = vmatprep.subr.bf16.mxu0 0
        %1850 = vmatpush2.bf16.msra.mxu0 0
        %1851 = vmatprep.subr.bf16.mxu0 0
        %1852 = vmatpush2.bf16.msra.mxu0 0
        %1853 = vmatprep.mubr.bf16.mxu0 0
        %1854 = vmatmul.mubr.bf16.gmra.mxu0 %v1819
        %v1855 = vpop.f32.mrf.mxu0
        %v1856 = vadd.f32 %v1804, %v1855
        %v1857 = vpop.f32.mrf.mxu0
        %v1858 = vpop.f32.mrf.mxu0
        %v1859 = vpop.f32.mrf.mxu0
        %1860 = vdwg.mxu0
        %1861 = vst.msk [vmem:[%s435] sm:$0xff] %vm651, %v1856
        %s1862 = sand.u32 %s297, 1
        %s1863 = scalar_lea.sflag [#allocation4], %s1862
        %s1864 = sand.u32 %s297, 1
        %s1865 = smul.addr %s1864, 8
        %s1866 = scalar_lea.vmem [#allocation3], %s1865
        // Predicated region
        $region69: #{tpu_custom_call.1} parent=63 // pred_check
          %p1867 = pneg %p307
        $region70: #{tpu_custom_call.1} parent=63 // pred_check_branch
          %1869 = sbr.rel (%p1867) target = $region72
        $region71: #{tpu_custom_call.1} parent=63 // pred_region
          %s1871 = ssub.s32 128, 128
          %1872 = vsyncadd %s1863, %s1871
          %s1873 = sadd.s32 %s30, %s29
          %s1874 = smul.addr %s1873, 128
          %s1875 = scalar_lea.hbm %s11, %s1874
          %s1877 = sshll.u32 %s1866, 4
          %s1878 = int_to_ptr.vmem [resolvable:$true] %s1877
          %1880 = dma.vmem_to_hbm [thread:$0]  %s1878, 128, %s1875, %s1863
        $region72: #{tpu_custom_call.1} parent=63 // pred_fallthru
          _
      $region64: #{tpu_custom_call.1} parent=5 // pred_fallthru
        _
      %p1881 = scmp.le.s32.totalorder 2, %s20
      // Predicated region
      $region73: #{tpu_custom_call.1} parent=5 // pred_check
        %p1882 = pneg %p1881
      $region74: #{tpu_custom_call.1} parent=5 // pred_check_branch
        %1884 = sbr.rel (%p1882) target = $region76
      $region75: #{tpu_custom_call.1} parent=5 // pred_region
        %s1885 = ssub.s32 %s20, 2
        // Predicated region
        $region77: #{tpu_custom_call.1} parent=75 // pred_check
          %p1886 = pneg %p313
        $region78: #{tpu_custom_call.1} parent=75 // pred_check_branch
          %1888 = sbr.rel (%p1886) target = $region80
        $region79: #{tpu_custom_call.1} parent=75 // pred_region
          %s1889 = sand.u32 %s298, 1
          %s1890 = scalar_lea.sflag [#allocation4], %s1889
          %s1891 = sand.u32 %s298, 1
          %s1892 = smul.addr %s1891, 8
          %s1893 = scalar_lea.vmem [#allocation3], %s1892
          %1894 = dma.done %s1890, 128
        $region80: #{tpu_custom_call.1} parent=75 // pred_fallthru
          _
      $region76: #{tpu_custom_call.1} parent=5 // pred_fallthru
        _
    $region6: #{tpu_custom_call.1} parent=1 // loop_footer
      %s24 = sadd.s32 1, %s20
    $region7: #{tpu_custom_call.1} parent=1 // loop_footer_branch
      %19 = sbr.rel target = $region3
    $region8: #{tpu_custom_call.1} parent=1 // loop_exit
      _
    %1895 = vsyncpa [#allocation4], 1
    %s1896 = scalar_lea.sflag [#allocation4], 1
    %1897 = vsyncpa %s1896, 1

</llo_original>
